<compile_context>
chip_gen: v5e
topology: v5e:2x2
jax: 0.10.0
libtpu: 0.0.40
codegen_flags: <defaults>
</compile_context>

<pallas_src>
import functools

import jax
import jax.numpy as jnp
import numpy as np
from jax.experimental import pallas as pl
from jax.experimental.pallas import tpu as pltpu

K = 7            # kernel_size
P = K // 2       # padding


def _spatial_attention_kernel(wmask_ref, x_ref, o_ref, stats_ref, *, img_w, block_n):
    # wmask_ref : VMEM f32[K*K, 2*block_n, HW]  conv weight * zero-pad validity,
    #                                           pre-broadcast across the block
    # x_ref     : VMEM  [block_n, C, HW]        lane-dense image block
    # o_ref     : VMEM  [block_n, C, HW]
    # stats_ref : VMEM f32[2*block_n, HW]       stacked [avg rows ; max rows]
    hw = x_ref.shape[-1]
    B = block_n

    # Per-image channel mean / max, written sublane-dense into the stats
    # scratch so the expensive 49-tap conv below runs once for the whole block.
    for i in range(B):
        xi = x_ref[i].astype(jnp.float32)                          # (C, HW)
        stats_ref[pl.ds(i, 1), :] = jnp.mean(xi, axis=0, keepdims=True)
        stats_ref[pl.ds(B + i, 1), :] = jnp.max(xi, axis=0, keepdims=True)
    stacked = stats_ref[...]                                       # (2B, HW) f32

    # 7x7 depth-2 conv as 49 taps: one lane-roll per tap (XLU slot) + one
    # multiply by the weight-folded boundary mask (VPU) + one add.  Four
    # independent accumulators break the serial add-dependency chain.
    n_acc = 4
    accs = [jnp.zeros((2 * B, hw), jnp.float32) for _ in range(n_acc)]
    for t in range(K * K):
        dh, dw = divmod(t, K)
        shift = ((P - dh) * img_w + (P - dw)) % hw
        rolled = pltpu.roll(stacked, shift=shift, axis=1) if shift else stacked
        accs[t % n_acc] = accs[t % n_acc] + rolled * wmask_ref[t]
    stats_ref[...] = (accs[0] + accs[1]) + (accs[2] + accs[3])     # (2B, HW)

    # gate_i = sigmoid(avg-stream conv + max-stream conv); apply to each image.
    for i in range(B):
        g = jax.nn.sigmoid(stats_ref[pl.ds(i, 1), :]
                           + stats_ref[pl.ds(B + i, 1), :])        # (1, HW)
        o_ref[i] = (x_ref[i].astype(jnp.float32) * g).astype(o_ref.dtype)


def _conv_tap_masks(h, w, hw_pad):
    """f32[K*K, hw_pad]: validity of each 7x7 tap for a zero-padded conv."""
    hh = np.arange(h)[:, None]
    ww = np.arange(w)[None, :]
    masks = np.zeros((K * K, hw_pad), np.float32)
    for dh in range(K):
        for dw in range(K):
            ok = ((hh + dh - P >= 0) & (hh + dh - P < h) &
                  (ww + dw - P >= 0) & (ww + dw - P < w))
            masks[dh * K + dw, : h * w] = ok.astype(np.float32).reshape(-1)
    return masks


def _vmem_capacity_bytes():
    try:
        return int(pltpu.get_tpu_info().vmem_capacity_bytes)
    except Exception:
        return 64 * 1024 * 1024   # conservative fallback (v7x-sized)


def _pick_block_n(n, c, hw_pad, itemsize):
    bytes_per_img = c * hw_pad * itemsize
    # ~2 MiB x blocks keep the double-buffered DMA pipeline busy.
    by_x = max(1, (2 * 1024 * 1024) // max(1, bytes_per_img))
    # Cap the pre-broadcast weighted-mask slab (~4 MiB).
    by_wmask = max(1, (4 * 1024 * 1024) // (K * K * 2 * hw_pad * 4))
    # Keep the tap-loop live set (~7 arrays of (2B, HW) f32) within ~48 vregs.
    by_vregs = max(1, (48 * 4096) // (7 * 2 * hw_pad * 4))
    # Keep >= 4 grid steps when N allows (>= 2 per TensorCore on v7x).
    by_steps = max(1, n // 4) if n >= 4 else max(1, (n + 1) // 2)
    b = max(1, min(by_x, by_wmask, by_vregs, by_steps, n))
    if b >= 4:
        b = (b // 4) * 4   # 2*block_n multiple of 8 -> full sublane vregs
    return b


def spatial_attention(x, conv_weight, *, block_n=None):
    """x: [N, C, H, W]; conv_weight: [1, 2, K, K] (Conv2d(2, 1, 7, bias=False))."""
    N, C, H, W = x.shape
    HW = H * W
    HW_pad = ((HW + 127) // 128) * 128     # lane-dense: multiple of 128 lanes

    x_flat = x.reshape(N, C, HW)
    if HW_pad != HW:
        x_flat = jnp.pad(x_flat, ((0, 0), (0, 0), (0, HW_pad - HW)))

    if block_n is None:
        block_n = _pick_block_n(N, C, HW_pad, x.dtype.itemsize)
    block_n = max(1, min(block_n, N))
    grid_n = pl.cdiv(N, block_n)

    # Fold conv weights into the per-tap zero-padding masks and pre-broadcast
    # across the stacked [avg rows ; max rows] layout (all ordinary XLA ops).
    masks = jnp.asarray(_conv_tap_masks(H, W, HW_pad))              # (49, HWp)
    w2 = conv_weight.reshape(2, K * K).astype(jnp.float32)          # [avg, max]
    wmask = w2[:, :, None] * masks[None, :, :]                      # (2, 49, HWp)
    wmask_b = jnp.broadcast_to(wmask[:, :, None, :],
                               (2, K * K, block_n, HW_pad))
    wmask_b = wmask_b.transpose(1, 0, 2, 3).reshape(K * K, 2 * block_n, HW_pad)

    kernel = functools.partial(_spatial_attention_kernel, img_w=W, block_n=block_n)

    vmem_cap = _vmem_capacity_bytes()
    vmem_limit = int(max(16 * 1024 * 1024,
                         min(vmem_cap // 2, 64 * 1024 * 1024)))

    # TODO(synk): when N == 1 on v7x, one of the two TensorCores stays idle;
    # a C- or HW-split second parallel grid axis would be needed to use both.
    out_flat = pl.pallas_call(
        kernel,
        out_shape=jax.ShapeDtypeStruct((N, C, HW_pad), x.dtype),
        grid_spec=pltpu.PrefetchScalarGridSpec(
            num_scalar_prefetch=0,
            grid=(grid_n,),
            in_specs=[
                pl.BlockSpec((K * K, 2 * block_n, HW_pad), lambda n: (0, 0, 0)),
                pl.BlockSpec((block_n, C, HW_pad), lambda n: (n, 0, 0)),
            ],
            out_specs=pl.BlockSpec((block_n, C, HW_pad), lambda n: (n, 0, 0)),
            scratch_shapes=[pltpu.VMEM((2 * block_n, HW_pad), jnp.float32)],
        ),
        compiler_params=pltpu.CompilerParams(
            dimension_semantics=("parallel",),
            vmem_limit_bytes=vmem_limit,
        ),
    )(wmask_b, x_flat)
    return out_flat[..., :HW].reshape(N, C, H, W)


def _reference(x, conv_weight):
    avg = jnp.mean(x, axis=1, keepdims=True)
    mx = jnp.max(x, axis=1, keepdims=True)
    cat = jnp.concatenate([avg, mx], axis=1)
    out = jax.lax.conv_general_dilated(
        cat, conv_weight, window_strides=(1, 1),
        padding=[(P, P), (P, P)],
        dimension_numbers=("NCHW", "OIHW", "NCHW"))
    return x * jax.nn.sigmoid(out)


if __name__ == "__main__":
    key = jax.random.PRNGKey(0)
    kx, kw, kx2, kw2 = jax.random.split(key, 4)

    fan_in = 2 * K * K
    bound = 1.0 / (fan_in ** 0.5)

    # Primary small shape consistent with the module: NCHW.
    N, C, H, W = 2, 4, 16, 16
    x = jax.random.normal(kx, (N, C, H, W), dtype=jnp.float32)
    conv_weight = jax.random.uniform(kw, (1, 2, K, K), jnp.float32, -bound, bound)

    y = jax.block_until_ready(spatial_attention(x, conv_weight))
    assert y.shape == (N, C, H, W)
    assert jnp.allclose(y, _reference(x, conv_weight), atol=1e-5, rtol=1e-5), \
        "mismatch vs reference (16x16)"

    # Secondary shape: exercises H*W lane-padding (120 -> 128) and a partial
    # final grid block (N % block_n != 0).
    N2, C2, H2, W2 = 3, 5, 12, 10
    x2 = jax.random.normal(kx2, (N2, C2, H2, W2), dtype=jnp.float32)
    w_b = jax.random.uniform(kw2, (1, 2, K, K), jnp.float32, -bound, bound)
    y2 = jax.block_until_ready(spatial_attention(x2, w_b))
    assert jnp.allclose(y2, _reference(x2, w_b), atol=1e-5, rtol=1e-5), \
        "mismatch vs reference (12x10)"

    print("KERNEL_OK")
</pallas_src>

<mosaic_0001>
module attributes {stable_mosaic.version = 11 : i64} {
  func.func @_spatial_attention_kernel(%arg0: i32, %arg1: memref<49x2x256xf32, #tpu.memory_space<vmem>>, %arg2: memref<1x4x256xf32, #tpu.memory_space<vmem>>, %arg3: memref<1x4x256xf32, #tpu.memory_space<vmem>>, %arg4: memref<2x256xf32, #tpu.memory_space<vmem>>) attributes {dimension_semantics = [#tpu.dimension_semantics<parallel>], iteration_bounds = array<i64: 2>, scalar_prefetch = 0 : i64, scratch_operands = 1 : i64, tpu.core_type = #tpu.core_type<tc>, window_params = [{pipeline_mode = #tpu.pipeline_mode<synchronous>, transform_indices = @transform_0, window_bounds = array<i64: 49, 2, 256>}, {transform_indices = @transform_1, window_bounds = array<i64: 1, 4, 256>}, {transform_indices = @transform_2, window_bounds = array<i64: 1, 4, 256>}]} {
    %c0 = arith.constant 0 : index
    %c0_0 = arith.constant 0 : index
    %c0_1 = arith.constant 0 : index
    %0 = vector.load %arg2[%c0, %c0_0, %c0_1] : memref<1x4x256xf32, #tpu.memory_space<vmem>>, vector<1x4x256xf32>
    %1 = vector.shape_cast %0 : vector<1x4x256xf32> to vector<4x256xf32>
    %cst = arith.constant dense<0.000000e+00> : vector<256xf32>
    %2 = vector.multi_reduction <add>, %1, %cst [0] : vector<4x256xf32> to vector<256xf32>
    %3 = vector.shape_cast %2 : vector<256xf32> to vector<1x256xf32>
    %cst_2 = arith.constant 4.000000e+00 : f32
    %4 = vector.broadcast %cst_2 : f32 to vector<1x256xf32>
    %5 = arith.divf %3, %4 : vector<1x256xf32>
    %c0_3 = arith.constant 0 : index
    %c0_4 = arith.constant 0 : index
    %6 = vector.load %arg4[%c0_3, %c0_4] : memref<2x256xf32, #tpu.memory_space<vmem>>, vector<1x256xf32>
    tpu.vector_store %arg4[%c0_3, %c0_4], %5 {strides = array<i32>} : memref<2x256xf32, #tpu.memory_space<vmem>>, vector<1x256xf32>,
    %cst_5 = arith.constant dense<0xFF800000> : vector<256xf32>
    %7 = vector.multi_reduction <maximumf>, %1, %cst_5 [0] : vector<4x256xf32> to vector<256xf32>
    %8 = vector.shape_cast %7 : vector<256xf32> to vector<1x256xf32>
    %c1 = arith.constant 1 : index
    %c0_6 = arith.constant 0 : index
    %9 = vector.load %arg4[%c1, %c0_6] : memref<2x256xf32, #tpu.memory_space<vmem>>, vector<1x256xf32>
    tpu.vector_store %arg4[%c1, %c0_6], %8 {strides = array<i32>} : memref<2x256xf32, #tpu.memory_space<vmem>>, vector<1x256xf32>,
    %c0_7 = arith.constant 0 : index
    %c0_8 = arith.constant 0 : index
    %10 = vector.load %arg4[%c0_7, %c0_8] : memref<2x256xf32, #tpu.memory_space<vmem>>, vector<2x256xf32>
    %cst_9 = arith.constant 0.000000e+00 : f32
    %11 = vector.broadcast %cst_9 : f32 to vector<2x256xf32>
    %cst_10 = arith.constant 0.000000e+00 : f32
    %12 = vector.broadcast %cst_10 : f32 to vector<2x256xf32>
    %cst_11 = arith.constant 0.000000e+00 : f32
    %13 = vector.broadcast %cst_11 : f32 to vector<2x256xf32>
    %cst_12 = arith.constant 0.000000e+00 : f32
    %14 = vector.broadcast %cst_12 : f32 to vector<2x256xf32>
    %c51_i32 = arith.constant 51 : i32
    %15 = tpu.dynamic_rotate %10 by %c51_i32 dim 1 : vector<2x256xf32>, i32 -> vector<2x256xf32>
    %c0_13 = arith.constant 0 : index
    %c0_14 = arith.constant 0 : index
    %c0_15 = arith.constant 0 : index
    %16 = vector.load %arg1[%c0_13, %c0_14, %c0_15] : memref<49x2x256xf32, #tpu.memory_space<vmem>>, vector<1x2x256xf32>
    %17 = vector.shape_cast %16 : vector<1x2x256xf32> to vector<2x256xf32>
    %18 = arith.mulf %15, %17 : vector<2x256xf32>
    %19 = arith.addf %11, %18 : vector<2x256xf32>
    %c50_i32 = arith.constant 50 : i32
    %20 = tpu.dynamic_rotate %10 by %c50_i32 dim 1 : vector<2x256xf32>, i32 -> vector<2x256xf32>
    %c1_16 = arith.constant 1 : index
    %c0_17 = arith.constant 0 : index
    %c0_18 = arith.constant 0 : index
    %21 = vector.load %arg1[%c1_16, %c0_17, %c0_18] : memref<49x2x256xf32, #tpu.memory_space<vmem>>, vector<1x2x256xf32>
    %22 = vector.shape_cast %21 : vector<1x2x256xf32> to vector<2x256xf32>
    %23 = arith.mulf %20, %22 : vector<2x256xf32>
    %24 = arith.addf %12, %23 : vector<2x256xf32>
    %c49_i32 = arith.constant 49 : i32
    %25 = tpu.dynamic_rotate %10 by %c49_i32 dim 1 : vector<2x256xf32>, i32 -> vector<2x256xf32>
    %c2 = arith.constant 2 : index
    %c0_19 = arith.constant 0 : index
    %c0_20 = arith.constant 0 : index
    %26 = vector.load %arg1[%c2, %c0_19, %c0_20] : memref<49x2x256xf32, #tpu.memory_space<vmem>>, vector<1x2x256xf32>
    %27 = vector.shape_cast %26 : vector<1x2x256xf32> to vector<2x256xf32>
    %28 = arith.mulf %25, %27 : vector<2x256xf32>
    %29 = arith.addf %13, %28 : vector<2x256xf32>
    %c48_i32 = arith.constant 48 : i32
    %30 = tpu.dynamic_rotate %10 by %c48_i32 dim 1 : vector<2x256xf32>, i32 -> vector<2x256xf32>
    %c3 = arith.constant 3 : index
    %c0_21 = arith.constant 0 : index
    %c0_22 = arith.constant 0 : index
    %31 = vector.load %arg1[%c3, %c0_21, %c0_22] : memref<49x2x256xf32, #tpu.memory_space<vmem>>, vector<1x2x256xf32>
    %32 = vector.shape_cast %31 : vector<1x2x256xf32> to vector<2x256xf32>
    %33 = arith.mulf %30, %32 : vector<2x256xf32>
    %34 = arith.addf %14, %33 : vector<2x256xf32>
    %c47_i32 = arith.constant 47 : i32
    %35 = tpu.dynamic_rotate %10 by %c47_i32 dim 1 : vector<2x256xf32>, i32 -> vector<2x256xf32>
    %c4 = arith.constant 4 : index
    %c0_23 = arith.constant 0 : index
    %c0_24 = arith.constant 0 : index
    %36 = vector.load %arg1[%c4, %c0_23, %c0_24] : memref<49x2x256xf32, #tpu.memory_space<vmem>>, vector<1x2x256xf32>
    %37 = vector.shape_cast %36 : vector<1x2x256xf32> to vector<2x256xf32>
    %38 = arith.mulf %35, %37 : vector<2x256xf32>
    %39 = arith.addf %19, %38 : vector<2x256xf32>
    %c46_i32 = arith.constant 46 : i32
    %40 = tpu.dynamic_rotate %10 by %c46_i32 dim 1 : vector<2x256xf32>, i32 -> vector<2x256xf32>
    %c5 = arith.constant 5 : index
    %c0_25 = arith.constant 0 : index
    %c0_26 = arith.constant 0 : index
    %41 = vector.load %arg1[%c5, %c0_25, %c0_26] : memref<49x2x256xf32, #tpu.memory_space<vmem>>, vector<1x2x256xf32>
    %42 = vector.shape_cast %41 : vector<1x2x256xf32> to vector<2x256xf32>
    %43 = arith.mulf %40, %42 : vector<2x256xf32>
    %44 = arith.addf %24, %43 : vector<2x256xf32>
    %c45_i32 = arith.constant 45 : i32
    %45 = tpu.dynamic_rotate %10 by %c45_i32 dim 1 : vector<2x256xf32>, i32 -> vector<2x256xf32>
    %c6 = arith.constant 6 : index
    %c0_27 = arith.constant 0 : index
    %c0_28 = arith.constant 0 : index
    %46 = vector.load %arg1[%c6, %c0_27, %c0_28] : memref<49x2x256xf32, #tpu.memory_space<vmem>>, vector<1x2x256xf32>
    %47 = vector.shape_cast %46 : vector<1x2x256xf32> to vector<2x256xf32>
    %48 = arith.mulf %45, %47 : vector<2x256xf32>
    %49 = arith.addf %29, %48 : vector<2x256xf32>
    %c35_i32 = arith.constant 35 : i32
    %50 = tpu.dynamic_rotate %10 by %c35_i32 dim 1 : vector<2x256xf32>, i32 -> vector<2x256xf32>
    %c7 = arith.constant 7 : index
    %c0_29 = arith.constant 0 : index
    %c0_30 = arith.constant 0 : index
    %51 = vector.load %arg1[%c7, %c0_29, %c0_30] : memref<49x2x256xf32, #tpu.memory_space<vmem>>, vector<1x2x256xf32>
    %52 = vector.shape_cast %51 : vector<1x2x256xf32> to vector<2x256xf32>
    %53 = arith.mulf %50, %52 : vector<2x256xf32>
    %54 = arith.addf %34, %53 : vector<2x256xf32>
    %c34_i32 = arith.constant 34 : i32
    %55 = tpu.dynamic_rotate %10 by %c34_i32 dim 1 : vector<2x256xf32>, i32 -> vector<2x256xf32>
    %c8 = arith.constant 8 : index
    %c0_31 = arith.constant 0 : index
    %c0_32 = arith.constant 0 : index
    %56 = vector.load %arg1[%c8, %c0_31, %c0_32] : memref<49x2x256xf32, #tpu.memory_space<vmem>>, vector<1x2x256xf32>
    %57 = vector.shape_cast %56 : vector<1x2x256xf32> to vector<2x256xf32>
    %58 = arith.mulf %55, %57 : vector<2x256xf32>
    %59 = arith.addf %39, %58 : vector<2x256xf32>
    %c33_i32 = arith.constant 33 : i32
    %60 = tpu.dynamic_rotate %10 by %c33_i32 dim 1 : vector<2x256xf32>, i32 -> vector<2x256xf32>
    %c9 = arith.constant 9 : index
    %c0_33 = arith.constant 0 : index
    %c0_34 = arith.constant 0 : index
    %61 = vector.load %arg1[%c9, %c0_33, %c0_34] : memref<49x2x256xf32, #tpu.memory_space<vmem>>, vector<1x2x256xf32>
    %62 = vector.shape_cast %61 : vector<1x2x256xf32> to vector<2x256xf32>
    %63 = arith.mulf %60, %62 : vector<2x256xf32>
    %64 = arith.addf %44, %63 : vector<2x256xf32>
    %c32_i32 = arith.constant 32 : i32
    %65 = tpu.dynamic_rotate %10 by %c32_i32 dim 1 : vector<2x256xf32>, i32 -> vector<2x256xf32>
    %c10 = arith.constant 10 : index
    %c0_35 = arith.constant 0 : index
    %c0_36 = arith.constant 0 : index
    %66 = vector.load %arg1[%c10, %c0_35, %c0_36] : memref<49x2x256xf32, #tpu.memory_space<vmem>>, vector<1x2x256xf32>
    %67 = vector.shape_cast %66 : vector<1x2x256xf32> to vector<2x256xf32>
    %68 = arith.mulf %65, %67 : vector<2x256xf32>
    %69 = arith.addf %49, %68 : vector<2x256xf32>
    %c31_i32 = arith.constant 31 : i32
    %70 = tpu.dynamic_rotate %10 by %c31_i32 dim 1 : vector<2x256xf32>, i32 -> vector<2x256xf32>
    %c11 = arith.constant 11 : index
    %c0_37 = arith.constant 0 : index
    %c0_38 = arith.constant 0 : index
    %71 = vector.load %arg1[%c11, %c0_37, %c0_38] : memref<49x2x256xf32, #tpu.memory_space<vmem>>, vector<1x2x256xf32>
    %72 = vector.shape_cast %71 : vector<1x2x256xf32> to vector<2x256xf32>
    %73 = arith.mulf %70, %72 : vector<2x256xf32>
    %74 = arith.addf %54, %73 : vector<2x256xf32>
    %c30_i32 = arith.constant 30 : i32
    %75 = tpu.dynamic_rotate %10 by %c30_i32 dim 1 : vector<2x256xf32>, i32 -> vector<2x256xf32>
    %c12 = arith.constant 12 : index
    %c0_39 = arith.constant 0 : index
    %c0_40 = arith.constant 0 : index
    %76 = vector.load %arg1[%c12, %c0_39, %c0_40] : memref<49x2x256xf32, #tpu.memory_space<vmem>>, vector<1x2x256xf32>
    %77 = vector.shape_cast %76 : vector<1x2x256xf32> to vector<2x256xf32>
    %78 = arith.mulf %75, %77 : vector<2x256xf32>
    %79 = arith.addf %59, %78 : vector<2x256xf32>
    %c29_i32 = arith.constant 29 : i32
    %80 = tpu.dynamic_rotate %10 by %c29_i32 dim 1 : vector<2x256xf32>, i32 -> vector<2x256xf32>
    %c13 = arith.constant 13 : index
    %c0_41 = arith.constant 0 : index
    %c0_42 = arith.constant 0 : index
    %81 = vector.load %arg1[%c13, %c0_41, %c0_42] : memref<49x2x256xf32, #tpu.memory_space<vmem>>, vector<1x2x256xf32>
    %82 = vector.shape_cast %81 : vector<1x2x256xf32> to vector<2x256xf32>
    %83 = arith.mulf %80, %82 : vector<2x256xf32>
    %84 = arith.addf %64, %83 : vector<2x256xf32>
    %c19_i32 = arith.constant 19 : i32
    %85 = tpu.dynamic_rotate %10 by %c19_i32 dim 1 : vector<2x256xf32>, i32 -> vector<2x256xf32>
    %c14 = arith.constant 14 : index
    %c0_43 = arith.constant 0 : index
    %c0_44 = arith.constant 0 : index
    %86 = vector.load %arg1[%c14, %c0_43, %c0_44] : memref<49x2x256xf32, #tpu.memory_space<vmem>>, vector<1x2x256xf32>
    %87 = vector.shape_cast %86 : vector<1x2x256xf32> to vector<2x256xf32>
    %88 = arith.mulf %85, %87 : vector<2x256xf32>
    %89 = arith.addf %69, %88 : vector<2x256xf32>
    %c18_i32 = arith.constant 18 : i32
    %90 = tpu.dynamic_rotate %10 by %c18_i32 dim 1 : vector<2x256xf32>, i32 -> vector<2x256xf32>
    %c15 = arith.constant 15 : index
    %c0_45 = arith.constant 0 : index
    %c0_46 = arith.constant 0 : index
    %91 = vector.load %arg1[%c15, %c0_45, %c0_46] : memref<49x2x256xf32, #tpu.memory_space<vmem>>, vector<1x2x256xf32>
    %92 = vector.shape_cast %91 : vector<1x2x256xf32> to vector<2x256xf32>
    %93 = arith.mulf %90, %92 : vector<2x256xf32>
    %94 = arith.addf %74, %93 : vector<2x256xf32>
    %c17_i32 = arith.constant 17 : i32
    %95 = tpu.dynamic_rotate %10 by %c17_i32 dim 1 : vector<2x256xf32>, i32 -> vector<2x256xf32>
    %c16 = arith.constant 16 : index
    %c0_47 = arith.constant 0 : index
    %c0_48 = arith.constant 0 : index
    %96 = vector.load %arg1[%c16, %c0_47, %c0_48] : memref<49x2x256xf32, #tpu.memory_space<vmem>>, vector<1x2x256xf32>
    %97 = vector.shape_cast %96 : vector<1x2x256xf32> to vector<2x256xf32>
    %98 = arith.mulf %95, %97 : vector<2x256xf32>
    %99 = arith.addf %79, %98 : vector<2x256xf32>
    %c16_i32 = arith.constant 16 : i32
    %100 = tpu.dynamic_rotate %10 by %c16_i32 dim 1 : vector<2x256xf32>, i32 -> vector<2x256xf32>
    %c17 = arith.constant 17 : index
    %c0_49 = arith.constant 0 : index
    %c0_50 = arith.constant 0 : index
    %101 = vector.load %arg1[%c17, %c0_49, %c0_50] : memref<49x2x256xf32, #tpu.memory_space<vmem>>, vector<1x2x256xf32>
    %102 = vector.shape_cast %101 : vector<1x2x256xf32> to vector<2x256xf32>
    %103 = arith.mulf %100, %102 : vector<2x256xf32>
    %104 = arith.addf %84, %103 : vector<2x256xf32>
    %c15_i32 = arith.constant 15 : i32
    %105 = tpu.dynamic_rotate %10 by %c15_i32 dim 1 : vector<2x256xf32>, i32 -> vector<2x256xf32>
    %c18 = arith.constant 18 : index
    %c0_51 = arith.constant 0 : index
    %c0_52 = arith.constant 0 : index
    %106 = vector.load %arg1[%c18, %c0_51, %c0_52] : memref<49x2x256xf32, #tpu.memory_space<vmem>>, vector<1x2x256xf32>
    %107 = vector.shape_cast %106 : vector<1x2x256xf32> to vector<2x256xf32>
    %108 = arith.mulf %105, %107 : vector<2x256xf32>
    %109 = arith.addf %89, %108 : vector<2x256xf32>
    %c14_i32 = arith.constant 14 : i32
    %110 = tpu.dynamic_rotate %10 by %c14_i32 dim 1 : vector<2x256xf32>, i32 -> vector<2x256xf32>
    %c19 = arith.constant 19 : index
    %c0_53 = arith.constant 0 : index
    %c0_54 = arith.constant 0 : index
    %111 = vector.load %arg1[%c19, %c0_53, %c0_54] : memref<49x2x256xf32, #tpu.memory_space<vmem>>, vector<1x2x256xf32>
    %112 = vector.shape_cast %111 : vector<1x2x256xf32> to vector<2x256xf32>
    %113 = arith.mulf %110, %112 : vector<2x256xf32>
    %114 = arith.addf %94, %113 : vector<2x256xf32>
    %c13_i32 = arith.constant 13 : i32
    %115 = tpu.dynamic_rotate %10 by %c13_i32 dim 1 : vector<2x256xf32>, i32 -> vector<2x256xf32>
    %c20 = arith.constant 20 : index
    %c0_55 = arith.constant 0 : index
    %c0_56 = arith.constant 0 : index
    %116 = vector.load %arg1[%c20, %c0_55, %c0_56] : memref<49x2x256xf32, #tpu.memory_space<vmem>>, vector<1x2x256xf32>
    %117 = vector.shape_cast %116 : vector<1x2x256xf32> to vector<2x256xf32>
    %118 = arith.mulf %115, %117 : vector<2x256xf32>
    %119 = arith.addf %99, %118 : vector<2x256xf32>
    %c3_i32 = arith.constant 3 : i32
    %120 = tpu.dynamic_rotate %10 by %c3_i32 dim 1 : vector<2x256xf32>, i32 -> vector<2x256xf32>
    %c21 = arith.constant 21 : index
    %c0_57 = arith.constant 0 : index
    %c0_58 = arith.constant 0 : index
    %121 = vector.load %arg1[%c21, %c0_57, %c0_58] : memref<49x2x256xf32, #tpu.memory_space<vmem>>, vector<1x2x256xf32>
    %122 = vector.shape_cast %121 : vector<1x2x256xf32> to vector<2x256xf32>
    %123 = arith.mulf %120, %122 : vector<2x256xf32>
    %124 = arith.addf %104, %123 : vector<2x256xf32>
    %c2_i32 = arith.constant 2 : i32
    %125 = tpu.dynamic_rotate %10 by %c2_i32 dim 1 : vector<2x256xf32>, i32 -> vector<2x256xf32>
    %c22 = arith.constant 22 : index
    %c0_59 = arith.constant 0 : index
    %c0_60 = arith.constant 0 : index
    %126 = vector.load %arg1[%c22, %c0_59, %c0_60] : memref<49x2x256xf32, #tpu.memory_space<vmem>>, vector<1x2x256xf32>
    %127 = vector.shape_cast %126 : vector<1x2x256xf32> to vector<2x256xf32>
    %128 = arith.mulf %125, %127 : vector<2x256xf32>
    %129 = arith.addf %109, %128 : vector<2x256xf32>
    %c1_i32 = arith.constant 1 : i32
    %130 = tpu.dynamic_rotate %10 by %c1_i32 dim 1 : vector<2x256xf32>, i32 -> vector<2x256xf32>
    %c23 = arith.constant 23 : index
    %c0_61 = arith.constant 0 : index
    %c0_62 = arith.constant 0 : index
    %131 = vector.load %arg1[%c23, %c0_61, %c0_62] : memref<49x2x256xf32, #tpu.memory_space<vmem>>, vector<1x2x256xf32>
    %132 = vector.shape_cast %131 : vector<1x2x256xf32> to vector<2x256xf32>
    %133 = arith.mulf %130, %132 : vector<2x256xf32>
    %134 = arith.addf %114, %133 : vector<2x256xf32>
    %c24 = arith.constant 24 : index
    %c0_63 = arith.constant 0 : index
    %c0_64 = arith.constant 0 : index
    %135 = vector.load %arg1[%c24, %c0_63, %c0_64] : memref<49x2x256xf32, #tpu.memory_space<vmem>>, vector<1x2x256xf32>
    %136 = vector.shape_cast %135 : vector<1x2x256xf32> to vector<2x256xf32>
    %137 = arith.mulf %10, %136 : vector<2x256xf32>
    %138 = arith.addf %119, %137 : vector<2x256xf32>
    %c255_i32 = arith.constant 255 : i32
    %139 = tpu.dynamic_rotate %10 by %c255_i32 dim 1 : vector<2x256xf32>, i32 -> vector<2x256xf32>
    %c25 = arith.constant 25 : index
    %c0_65 = arith.constant 0 : index
    %c0_66 = arith.constant 0 : index
    %140 = vector.load %arg1[%c25, %c0_65, %c0_66] : memref<49x2x256xf32, #tpu.memory_space<vmem>>, vector<1x2x256xf32>
    %141 = vector.shape_cast %140 : vector<1x2x256xf32> to vector<2x256xf32>
    %142 = arith.mulf %139, %141 : vector<2x256xf32>
    %143 = arith.addf %124, %142 : vector<2x256xf32>
    %c254_i32 = arith.constant 254 : i32
    %144 = tpu.dynamic_rotate %10 by %c254_i32 dim 1 : vector<2x256xf32>, i32 -> vector<2x256xf32>
    %c26 = arith.constant 26 : index
    %c0_67 = arith.constant 0 : index
    %c0_68 = arith.constant 0 : index
    %145 = vector.load %arg1[%c26, %c0_67, %c0_68] : memref<49x2x256xf32, #tpu.memory_space<vmem>>, vector<1x2x256xf32>
    %146 = vector.shape_cast %145 : vector<1x2x256xf32> to vector<2x256xf32>
    %147 = arith.mulf %144, %146 : vector<2x256xf32>
    %148 = arith.addf %129, %147 : vector<2x256xf32>
    %c253_i32 = arith.constant 253 : i32
    %149 = tpu.dynamic_rotate %10 by %c253_i32 dim 1 : vector<2x256xf32>, i32 -> vector<2x256xf32>
    %c27 = arith.constant 27 : index
    %c0_69 = arith.constant 0 : index
    %c0_70 = arith.constant 0 : index
    %150 = vector.load %arg1[%c27, %c0_69, %c0_70] : memref<49x2x256xf32, #tpu.memory_space<vmem>>, vector<1x2x256xf32>
    %151 = vector.shape_cast %150 : vector<1x2x256xf32> to vector<2x256xf32>
    %152 = arith.mulf %149, %151 : vector<2x256xf32>
    %153 = arith.addf %134, %152 : vector<2x256xf32>
    %c243_i32 = arith.constant 243 : i32
    %154 = tpu.dynamic_rotate %10 by %c243_i32 dim 1 : vector<2x256xf32>, i32 -> vector<2x256xf32>
    %c28 = arith.constant 28 : index
    %c0_71 = arith.constant 0 : index
    %c0_72 = arith.constant 0 : index
    %155 = vector.load %arg1[%c28, %c0_71, %c0_72] : memref<49x2x256xf32, #tpu.memory_space<vmem>>, vector<1x2x256xf32>
    %156 = vector.shape_cast %155 : vector<1x2x256xf32> to vector<2x256xf32>
    %157 = arith.mulf %154, %156 : vector<2x256xf32>
    %158 = arith.addf %138, %157 : vector<2x256xf32>
    %c242_i32 = arith.constant 242 : i32
    %159 = tpu.dynamic_rotate %10 by %c242_i32 dim 1 : vector<2x256xf32>, i32 -> vector<2x256xf32>
    %c29 = arith.constant 29 : index
    %c0_73 = arith.constant 0 : index
    %c0_74 = arith.constant 0 : index
    %160 = vector.load %arg1[%c29, %c0_73, %c0_74] : memref<49x2x256xf32, #tpu.memory_space<vmem>>, vector<1x2x256xf32>
    %161 = vector.shape_cast %160 : vector<1x2x256xf32> to vector<2x256xf32>
    %162 = arith.mulf %159, %161 : vector<2x256xf32>
    %163 = arith.addf %143, %162 : vector<2x256xf32>
    %c241_i32 = arith.constant 241 : i32
    %164 = tpu.dynamic_rotate %10 by %c241_i32 dim 1 : vector<2x256xf32>, i32 -> vector<2x256xf32>
    %c30 = arith.constant 30 : index
    %c0_75 = arith.constant 0 : index
    %c0_76 = arith.constant 0 : index
    %165 = vector.load %arg1[%c30, %c0_75, %c0_76] : memref<49x2x256xf32, #tpu.memory_space<vmem>>, vector<1x2x256xf32>
    %166 = vector.shape_cast %165 : vector<1x2x256xf32> to vector<2x256xf32>
    %167 = arith.mulf %164, %166 : vector<2x256xf32>
    %168 = arith.addf %148, %167 : vector<2x256xf32>
    %c240_i32 = arith.constant 240 : i32
    %169 = tpu.dynamic_rotate %10 by %c240_i32 dim 1 : vector<2x256xf32>, i32 -> vector<2x256xf32>
    %c31 = arith.constant 31 : index
    %c0_77 = arith.constant 0 : index
    %c0_78 = arith.constant 0 : index
    %170 = vector.load %arg1[%c31, %c0_77, %c0_78] : memref<49x2x256xf32, #tpu.memory_space<vmem>>, vector<1x2x256xf32>
    %171 = vector.shape_cast %170 : vector<1x2x256xf32> to vector<2x256xf32>
    %172 = arith.mulf %169, %171 : vector<2x256xf32>
    %173 = arith.addf %153, %172 : vector<2x256xf32>
    %c239_i32 = arith.constant 239 : i32
    %174 = tpu.dynamic_rotate %10 by %c239_i32 dim 1 : vector<2x256xf32>, i32 -> vector<2x256xf32>
    %c32 = arith.constant 32 : index
    %c0_79 = arith.constant 0 : index
    %c0_80 = arith.constant 0 : index
    %175 = vector.load %arg1[%c32, %c0_79, %c0_80] : memref<49x2x256xf32, #tpu.memory_space<vmem>>, vector<1x2x256xf32>
    %176 = vector.shape_cast %175 : vector<1x2x256xf32> to vector<2x256xf32>
    %177 = arith.mulf %174, %176 : vector<2x256xf32>
    %178 = arith.addf %158, %177 : vector<2x256xf32>
    %c238_i32 = arith.constant 238 : i32
    %179 = tpu.dynamic_rotate %10 by %c238_i32 dim 1 : vector<2x256xf32>, i32 -> vector<2x256xf32>
    %c33 = arith.constant 33 : index
    %c0_81 = arith.constant 0 : index
    %c0_82 = arith.constant 0 : index
    %180 = vector.load %arg1[%c33, %c0_81, %c0_82] : memref<49x2x256xf32, #tpu.memory_space<vmem>>, vector<1x2x256xf32>
    %181 = vector.shape_cast %180 : vector<1x2x256xf32> to vector<2x256xf32>
    %182 = arith.mulf %179, %181 : vector<2x256xf32>
    %183 = arith.addf %163, %182 : vector<2x256xf32>
    %c237_i32 = arith.constant 237 : i32
    %184 = tpu.dynamic_rotate %10 by %c237_i32 dim 1 : vector<2x256xf32>, i32 -> vector<2x256xf32>
    %c34 = arith.constant 34 : index
    %c0_83 = arith.constant 0 : index
    %c0_84 = arith.constant 0 : index
    %185 = vector.load %arg1[%c34, %c0_83, %c0_84] : memref<49x2x256xf32, #tpu.memory_space<vmem>>, vector<1x2x256xf32>
    %186 = vector.shape_cast %185 : vector<1x2x256xf32> to vector<2x256xf32>
    %187 = arith.mulf %184, %186 : vector<2x256xf32>
    %188 = arith.addf %168, %187 : vector<2x256xf32>
    %c227_i32 = arith.constant 227 : i32
    %189 = tpu.dynamic_rotate %10 by %c227_i32 dim 1 : vector<2x256xf32>, i32 -> vector<2x256xf32>
    %c35 = arith.constant 35 : index
    %c0_85 = arith.constant 0 : index
    %c0_86 = arith.constant 0 : index
    %190 = vector.load %arg1[%c35, %c0_85, %c0_86] : memref<49x2x256xf32, #tpu.memory_space<vmem>>, vector<1x2x256xf32>
    %191 = vector.shape_cast %190 : vector<1x2x256xf32> to vector<2x256xf32>
    %192 = arith.mulf %189, %191 : vector<2x256xf32>
    %193 = arith.addf %173, %192 : vector<2x256xf32>
    %c226_i32 = arith.constant 226 : i32
    %194 = tpu.dynamic_rotate %10 by %c226_i32 dim 1 : vector<2x256xf32>, i32 -> vector<2x256xf32>
    %c36 = arith.constant 36 : index
    %c0_87 = arith.constant 0 : index
    %c0_88 = arith.constant 0 : index
    %195 = vector.load %arg1[%c36, %c0_87, %c0_88] : memref<49x2x256xf32, #tpu.memory_space<vmem>>, vector<1x2x256xf32>
    %196 = vector.shape_cast %195 : vector<1x2x256xf32> to vector<2x256xf32>
    %197 = arith.mulf %194, %196 : vector<2x256xf32>
    %198 = arith.addf %178, %197 : vector<2x256xf32>
    %c225_i32 = arith.constant 225 : i32
    %199 = tpu.dynamic_rotate %10 by %c225_i32 dim 1 : vector<2x256xf32>, i32 -> vector<2x256xf32>
    %c37 = arith.constant 37 : index
    %c0_89 = arith.constant 0 : index
    %c0_90 = arith.constant 0 : index
    %200 = vector.load %arg1[%c37, %c0_89, %c0_90] : memref<49x2x256xf32, #tpu.memory_space<vmem>>, vector<1x2x256xf32>
    %201 = vector.shape_cast %200 : vector<1x2x256xf32> to vector<2x256xf32>
    %202 = arith.mulf %199, %201 : vector<2x256xf32>
    %203 = arith.addf %183, %202 : vector<2x256xf32>
    %c224_i32 = arith.constant 224 : i32
    %204 = tpu.dynamic_rotate %10 by %c224_i32 dim 1 : vector<2x256xf32>, i32 -> vector<2x256xf32>
    %c38 = arith.constant 38 : index
    %c0_91 = arith.constant 0 : index
    %c0_92 = arith.constant 0 : index
    %205 = vector.load %arg1[%c38, %c0_91, %c0_92] : memref<49x2x256xf32, #tpu.memory_space<vmem>>, vector<1x2x256xf32>
    %206 = vector.shape_cast %205 : vector<1x2x256xf32> to vector<2x256xf32>
    %207 = arith.mulf %204, %206 : vector<2x256xf32>
    %208 = arith.addf %188, %207 : vector<2x256xf32>
    %c223_i32 = arith.constant 223 : i32
    %209 = tpu.dynamic_rotate %10 by %c223_i32 dim 1 : vector<2x256xf32>, i32 -> vector<2x256xf32>
    %c39 = arith.constant 39 : index
    %c0_93 = arith.constant 0 : index
    %c0_94 = arith.constant 0 : index
    %210 = vector.load %arg1[%c39, %c0_93, %c0_94] : memref<49x2x256xf32, #tpu.memory_space<vmem>>, vector<1x2x256xf32>
    %211 = vector.shape_cast %210 : vector<1x2x256xf32> to vector<2x256xf32>
    %212 = arith.mulf %209, %211 : vector<2x256xf32>
    %213 = arith.addf %193, %212 : vector<2x256xf32>
    %c222_i32 = arith.constant 222 : i32
    %214 = tpu.dynamic_rotate %10 by %c222_i32 dim 1 : vector<2x256xf32>, i32 -> vector<2x256xf32>
    %c40 = arith.constant 40 : index
    %c0_95 = arith.constant 0 : index
    %c0_96 = arith.constant 0 : index
    %215 = vector.load %arg1[%c40, %c0_95, %c0_96] : memref<49x2x256xf32, #tpu.memory_space<vmem>>, vector<1x2x256xf32>
    %216 = vector.shape_cast %215 : vector<1x2x256xf32> to vector<2x256xf32>
    %217 = arith.mulf %214, %216 : vector<2x256xf32>
    %218 = arith.addf %198, %217 : vector<2x256xf32>
    %c221_i32 = arith.constant 221 : i32
    %219 = tpu.dynamic_rotate %10 by %c221_i32 dim 1 : vector<2x256xf32>, i32 -> vector<2x256xf32>
    %c41 = arith.constant 41 : index
    %c0_97 = arith.constant 0 : index
    %c0_98 = arith.constant 0 : index
    %220 = vector.load %arg1[%c41, %c0_97, %c0_98] : memref<49x2x256xf32, #tpu.memory_space<vmem>>, vector<1x2x256xf32>
    %221 = vector.shape_cast %220 : vector<1x2x256xf32> to vector<2x256xf32>
    %222 = arith.mulf %219, %221 : vector<2x256xf32>
    %223 = arith.addf %203, %222 : vector<2x256xf32>
    %c211_i32 = arith.constant 211 : i32
    %224 = tpu.dynamic_rotate %10 by %c211_i32 dim 1 : vector<2x256xf32>, i32 -> vector<2x256xf32>
    %c42 = arith.constant 42 : index
    %c0_99 = arith.constant 0 : index
    %c0_100 = arith.constant 0 : index
    %225 = vector.load %arg1[%c42, %c0_99, %c0_100] : memref<49x2x256xf32, #tpu.memory_space<vmem>>, vector<1x2x256xf32>
    %226 = vector.shape_cast %225 : vector<1x2x256xf32> to vector<2x256xf32>
    %227 = arith.mulf %224, %226 : vector<2x256xf32>
    %228 = arith.addf %208, %227 : vector<2x256xf32>
    %c210_i32 = arith.constant 210 : i32
    %229 = tpu.dynamic_rotate %10 by %c210_i32 dim 1 : vector<2x256xf32>, i32 -> vector<2x256xf32>
    %c43 = arith.constant 43 : index
    %c0_101 = arith.constant 0 : index
    %c0_102 = arith.constant 0 : index
    %230 = vector.load %arg1[%c43, %c0_101, %c0_102] : memref<49x2x256xf32, #tpu.memory_space<vmem>>, vector<1x2x256xf32>
    %231 = vector.shape_cast %230 : vector<1x2x256xf32> to vector<2x256xf32>
    %232 = arith.mulf %229, %231 : vector<2x256xf32>
    %233 = arith.addf %213, %232 : vector<2x256xf32>
    %c209_i32 = arith.constant 209 : i32
    %234 = tpu.dynamic_rotate %10 by %c209_i32 dim 1 : vector<2x256xf32>, i32 -> vector<2x256xf32>
    %c44 = arith.constant 44 : index
    %c0_103 = arith.constant 0 : index
    %c0_104 = arith.constant 0 : index
    %235 = vector.load %arg1[%c44, %c0_103, %c0_104] : memref<49x2x256xf32, #tpu.memory_space<vmem>>, vector<1x2x256xf32>
    %236 = vector.shape_cast %235 : vector<1x2x256xf32> to vector<2x256xf32>
    %237 = arith.mulf %234, %236 : vector<2x256xf32>
    %238 = arith.addf %218, %237 : vector<2x256xf32>
    %c208_i32 = arith.constant 208 : i32
    %239 = tpu.dynamic_rotate %10 by %c208_i32 dim 1 : vector<2x256xf32>, i32 -> vector<2x256xf32>
    %c45 = arith.constant 45 : index
    %c0_105 = arith.constant 0 : index
    %c0_106 = arith.constant 0 : index
    %240 = vector.load %arg1[%c45, %c0_105, %c0_106] : memref<49x2x256xf32, #tpu.memory_space<vmem>>, vector<1x2x256xf32>
    %241 = vector.shape_cast %240 : vector<1x2x256xf32> to vector<2x256xf32>
    %242 = arith.mulf %239, %241 : vector<2x256xf32>
    %243 = arith.addf %223, %242 : vector<2x256xf32>
    %c207_i32 = arith.constant 207 : i32
    %244 = tpu.dynamic_rotate %10 by %c207_i32 dim 1 : vector<2x256xf32>, i32 -> vector<2x256xf32>
    %c46 = arith.constant 46 : index
    %c0_107 = arith.constant 0 : index
    %c0_108 = arith.constant 0 : index
    %245 = vector.load %arg1[%c46, %c0_107, %c0_108] : memref<49x2x256xf32, #tpu.memory_space<vmem>>, vector<1x2x256xf32>
    %246 = vector.shape_cast %245 : vector<1x2x256xf32> to vector<2x256xf32>
    %247 = arith.mulf %244, %246 : vector<2x256xf32>
    %248 = arith.addf %228, %247 : vector<2x256xf32>
    %c206_i32 = arith.constant 206 : i32
    %249 = tpu.dynamic_rotate %10 by %c206_i32 dim 1 : vector<2x256xf32>, i32 -> vector<2x256xf32>
    %c47 = arith.constant 47 : index
    %c0_109 = arith.constant 0 : index
    %c0_110 = arith.constant 0 : index
    %250 = vector.load %arg1[%c47, %c0_109, %c0_110] : memref<49x2x256xf32, #tpu.memory_space<vmem>>, vector<1x2x256xf32>
    %251 = vector.shape_cast %250 : vector<1x2x256xf32> to vector<2x256xf32>
    %252 = arith.mulf %249, %251 : vector<2x256xf32>
    %253 = arith.addf %233, %252 : vector<2x256xf32>
    %c205_i32 = arith.constant 205 : i32
    %254 = tpu.dynamic_rotate %10 by %c205_i32 dim 1 : vector<2x256xf32>, i32 -> vector<2x256xf32>
    %c48 = arith.constant 48 : index
    %c0_111 = arith.constant 0 : index
    %c0_112 = arith.constant 0 : index
    %255 = vector.load %arg1[%c48, %c0_111, %c0_112] : memref<49x2x256xf32, #tpu.memory_space<vmem>>, vector<1x2x256xf32>
    %256 = vector.shape_cast %255 : vector<1x2x256xf32> to vector<2x256xf32>
    %257 = arith.mulf %254, %256 : vector<2x256xf32>
    %258 = arith.addf %238, %257 : vector<2x256xf32>
    %259 = arith.addf %258, %243 : vector<2x256xf32>
    %260 = arith.addf %248, %253 : vector<2x256xf32>
    %261 = arith.addf %259, %260 : vector<2x256xf32>
    %c0_113 = arith.constant 0 : index
    %c0_114 = arith.constant 0 : index
    %262 = vector.load %arg4[%c0_113, %c0_114] : memref<2x256xf32, #tpu.memory_space<vmem>>, vector<2x256xf32>
    tpu.vector_store %arg4[%c0_113, %c0_114], %261 {strides = array<i32>} : memref<2x256xf32, #tpu.memory_space<vmem>>, vector<2x256xf32>,
    %c0_115 = arith.constant 0 : index
    %c0_116 = arith.constant 0 : index
    %263 = vector.load %arg4[%c0_115, %c0_116] : memref<2x256xf32, #tpu.memory_space<vmem>>, vector<1x256xf32>
    %c1_117 = arith.constant 1 : index
    %c0_118 = arith.constant 0 : index
    %264 = vector.load %arg4[%c1_117, %c0_118] : memref<2x256xf32, #tpu.memory_space<vmem>>, vector<1x256xf32>
    %265 = arith.addf %263, %264 : vector<1x256xf32>
    %266 = arith.negf %265 : vector<1x256xf32>
    %267 = math.exp %266 : vector<1x256xf32>
    %cst_119 = arith.constant 1.000000e+00 : f32
    %268 = vector.broadcast %cst_119 : f32 to vector<1x256xf32>
    %269 = arith.addf %268, %267 : vector<1x256xf32>
    %270 = arith.divf %268, %269 : vector<1x256xf32>
    %c0_120 = arith.constant 0 : index
    %c0_121 = arith.constant 0 : index
    %c0_122 = arith.constant 0 : index
    %271 = vector.load %arg2[%c0_120, %c0_121, %c0_122] : memref<1x4x256xf32, #tpu.memory_space<vmem>>, vector<1x4x256xf32>
    %272 = vector.shape_cast %271 : vector<1x4x256xf32> to vector<4x256xf32>
    %273 = vector.broadcast %270 : vector<1x256xf32> to vector<4x256xf32>
    %274 = arith.mulf %272, %273 : vector<4x256xf32>
    %c0_123 = arith.constant 0 : index
    %c0_124 = arith.constant 0 : index
    %c0_125 = arith.constant 0 : index
    %275 = vector.load %arg3[%c0_123, %c0_124, %c0_125] : memref<1x4x256xf32, #tpu.memory_space<vmem>>, vector<1x4x256xf32>
    %276 = vector.shape_cast %275 : vector<1x4x256xf32> to vector<4x256xf32>
    %277 = vector.shape_cast %274 : vector<4x256xf32> to vector<1x4x256xf32>
    tpu.vector_store %arg3[%c0_123, %c0_124, %c0_125], %277 {strides = array<i32>} : memref<1x4x256xf32, #tpu.memory_space<vmem>>, vector<1x4x256xf32>,
    return
  }
  func.func @transform_0(%arg0: i32) -> (i32, i32, i32) {
    %c0_i32 = arith.constant 0 : i32
    %c0_i32_0 = arith.constant 0 : i32
    %c0_i32_1 = arith.constant 0 : i32
    %c0_i32_2 = arith.constant 0 : i32
    return %c0_i32, %c0_i32_0, %c0_i32_1 : i32, i32, i32
  }
  func.func @transform_1(%arg0: i32) -> (i32, i32, i32) {
    %c0_i32 = arith.constant 0 : i32
    %c0_i32_0 = arith.constant 0 : i32
    %c0_i32_1 = arith.constant 0 : i32
    return %arg0, %c0_i32, %c0_i32_0 : i32, i32, i32
  }
  func.func @transform_2(%arg0: i32) -> (i32, i32, i32) {
    %c0_i32 = arith.constant 0 : i32
    %c0_i32_0 = arith.constant 0 : i32
    %c0_i32_1 = arith.constant 0 : i32
    return %arg0, %c0_i32, %c0_i32_0 : i32, i32, i32
  }
}

</mosaic_0001>

<llo_original>
// kernel: tpu_custom_call.1
$region0: #{tpu_custom_call.1}
  #allocation0 [shape = 'u32[]', space=smem, size = 0x4, offset = 0x4, fixed_abs, tag = 'smem constant byte address 0x4 - core index']
  #allocation1 [shape = 'u32[72,128]{1,0:T(1,128)}', space=vmem, size = 0x9000, scoped, tag = 'internal scratch']
  #allocation2 [shape = 'f32[2,256]{1,0:T(2,128)}', space=vmem, size = 0x800, scoped, tag = 'scratch operand']
  %s0 = inlined_call_operand.hbm [shape: f32[49,2,256], index: 0, kind: input, shape index: {}]
  %s1 = inlined_call_operand.hbm [shape: f32[2,4,256], index: 1, kind: input, shape index: {}]
  %s2 = inlined_call_operand.hbm [shape: f32[2,4,256], index: 2, kind: output, shape index: {}]
  %s3 = sld [smem:[#allocation0]]
  $region49: #{tpu_custom_call.1} parent=0
    _
  %s5 = ssub.s32 1, %s3
  %s6 = scalar_select 0, %s5, %s3
  $region1: #{tpu_custom_call.1} parent=0
    #allocation3 [shape = 'u8[100352]{0}', space=vmem, size = 0x18800, scoped, tag = 'input window, operand 0, single buffered']
    #allocation4 [shape = 's32[2]{0}', space=sflag, size = 0x8, scoped, tag = 'scoped memory for tpu_custom_call.1']
    #allocation5 [shape = 's32[2]{0}', space=sflag, size = 0x8, scoped, tag = 'scoped memory for tpu_custom_call.1']
    #allocation6 [shape = 'u8[8192]{0}', space=vmem, size = 0x2000, scoped, tag = 'input window, operand 1']
    #allocation7 [shape = 's32[2]{0}', space=sflag, size = 0x8, scoped, tag = 'scoped memory for tpu_custom_call.1']
    #allocation8 [shape = 'u8[8192]{0}', space=vmem, size = 0x2000, scoped, tag = 'output window, operand 0']
    %7 = vsyncpa [#allocation4], 0
    %8 = vsyncpa [#allocation7], 0
    %s9 = scalar_lea.sflag [#allocation7], 1
    %10 = vsyncpa %s9, 0
    %11 = vsyncpa [#allocation5], 0
    %s12 = scalar_lea.sflag [#allocation5], 1
    %13 = vsyncpa %s12, 0
    loop: start=0, step=1, limit=4
    $region2: #{tpu_custom_call.1} parent=1 // loop_pre_header
      _
    $region3: #{tpu_custom_call.1} parent=1 // loop_header
      %s15 = sphi 0, %s19
      %p16 = scmp.ge.s32.totalorder %s15, 4
      %s23 = sphi 0, %s23
      %s25 = sphi 0, %s23
      %s26 = sphi 0, %s25
      %s40 = sphi 0, %s26
      %s46 = sphi 0, %s48
      %s49 = sphi 0, %s46
      %s50 = sphi 0, %s49
      %s66 = sphi 0, %s50
      %s72 = sphi 0, %s74
      %s75 = sphi 0, %s72
      %s76 = sphi 0, %s75
      %s92 = sphi 0, %s76
    $region4: #{tpu_custom_call.1} parent=1 // loop_header_branch
      %18 = sbr.rel (%p16) target = $region8
    $region5: #{tpu_custom_call.1} parent=1 // loop_body
      %s20 = ssub.s32 %s15, 1
      %s21 = ssub.s32 %s15, 2
      %s22 = sadd.s32 %s15, 1
      %s24 = sadd.s32 %s23, 1
      %p27 = scmp.eq.s32.totalorder %s15, 1
      %p28 = scmp.ne.s32.totalorder %s23, %s25
      %p29 = scmp.eq.s32.totalorder %s15, 0
      %p30 = por %p28, %p29
      %p31 = scmp.ne.s32.totalorder %s23, %s25
      %p32 = scmp.eq.s32.totalorder %s20, 1
      %p33 = por %p31, %p32
      %p34 = scmp.ne.s32.totalorder %s25, %s26
      %p35 = scmp.eq.s32.totalorder %s20, 0
      %p36 = por %p34, %p35
      %p37 = scmp.ne.s32.totalorder %s25, %s26
      %p38 = scmp.eq.s32.totalorder %s21, 1
      %p39 = por %p37, %p38
      %p41 = scmp.ne.s32.totalorder %s26, %s40
      %p42 = scmp.eq.s32.totalorder %s21, 0
      %p43 = por %p41, %p42
      %s44 = ssub.s32 %s15, %s22
      %p45 = scmp.eq.s32.totalorder %s44, 0
      %s47 = sadd.s32 %s46, 1
      %s48 = scalar_select %p45, %s46, %s47
      %p51 = pneg %p45
      %p52 = scmp.eq.s32.totalorder %s15, 1
      %p53 = por %p51, %p52
      %p54 = scmp.ne.s32.totalorder %s46, %s49
      %p55 = scmp.eq.s32.totalorder %s15, 0
      %p56 = por %p54, %p55
      %p57 = scmp.ne.s32.totalorder %s46, %s49
      %p58 = scmp.eq.s32.totalorder %s20, 1
      %p59 = por %p57, %p58
      %p60 = scmp.ne.s32.totalorder %s49, %s50
      %p61 = scmp.eq.s32.totalorder %s20, 0
      %p62 = por %p60, %p61
      %p63 = scmp.ne.s32.totalorder %s49, %s50
      %p64 = scmp.eq.s32.totalorder %s21, 1
      %p65 = por %p63, %p64
      %p67 = scmp.ne.s32.totalorder %s50, %s66
      %p68 = scmp.eq.s32.totalorder %s21, 0
      %p69 = por %p67, %p68
      %s70 = ssub.s32 %s15, %s22
      %p71 = scmp.eq.s32.totalorder %s70, 0
      %s73 = sadd.s32 %s72, 1
      %s74 = scalar_select %p71, %s72, %s73
      %p77 = pneg %p71
      %p78 = scmp.eq.s32.totalorder %s15, 1
      %p79 = por %p77, %p78
      %p80 = scmp.ne.s32.totalorder %s72, %s75
      %p81 = scmp.eq.s32.totalorder %s15, 0
      %p82 = por %p80, %p81
      %p83 = scmp.ne.s32.totalorder %s72, %s75
      %p84 = scmp.eq.s32.totalorder %s20, 1
      %p85 = por %p83, %p84
      %p86 = scmp.ne.s32.totalorder %s75, %s76
      %p87 = scmp.eq.s32.totalorder %s20, 0
      %p88 = por %p86, %p87
      %p89 = scmp.ne.s32.totalorder %s75, %s76
      %p90 = scmp.eq.s32.totalorder %s21, 1
      %p91 = por %p89, %p90
      %p93 = scmp.ne.s32.totalorder %s76, %s92
      %p94 = scmp.eq.s32.totalorder %s21, 0
      %p95 = por %p93, %p94
      %p96 = scmp.le.s32.totalorder 1, %s15
      %p97 = scmp.lt.s32.totalorder %s15, 3
      %p98 = pnand %p96, %p97
      %p99 = pneg %p98
      // Predicated region
      $region9: #{tpu_custom_call.1} parent=5 // pred_check
        _
      $region10: #{tpu_custom_call.1} parent=5 // pred_check_branch
        %101 = sbr.rel (%p98) target = $region12
      $region11: #{tpu_custom_call.1} parent=5 // pred_region
        %s102 = ssub.s32 %s15, 1
        // Predicated region
        $region13: #{tpu_custom_call.1} parent=11 // pred_check
          %p103 = pneg %p36
        $region14: #{tpu_custom_call.1} parent=11 // pred_check_branch
          %105 = sbr.rel (%p103) target = $region16
        $region15: #{tpu_custom_call.1} parent=11 // pred_region
          %107 = vsyncadd [#allocation4], 0
          %s108 = sshll.u32 %s0, 4
          %s109 = int_to_ptr.hbm [resolvable:$true] %s108
          %s110 = sshll.u32 [#allocation3], 4
          %s111 = int_to_ptr.vmem [resolvable:$true] %s110
          %116 = dma.hbm_to_vmem [thread:$0]  %s109, 3136, %s111, [#allocation4], 64, 64, 4
        $region16: #{tpu_custom_call.1} parent=11 // pred_fallthru
          _
      $region12: #{tpu_custom_call.1} parent=5 // pred_fallthru
        _
      %p117 = scmp.lt.s32.totalorder %s15, 2
      // Predicated region
      $region17: #{tpu_custom_call.1} parent=5 // pred_check
        %p118 = pneg %p117
      $region18: #{tpu_custom_call.1} parent=5 // pred_check_branch
        %120 = sbr.rel (%p118) target = $region20
      $region19: #{tpu_custom_call.1} parent=5 // pred_region
        // Predicated region
        $region21: #{tpu_custom_call.1} parent=19 // pred_check
          %p121 = pneg %p56
        $region22: #{tpu_custom_call.1} parent=19 // pred_check_branch
          %123 = sbr.rel (%p121) target = $region24
        $region23: #{tpu_custom_call.1} parent=19 // pred_region
          %s124 = sand.u32 %s46, 1
          %s125 = scalar_lea.sflag [#allocation7], %s124
          %s126 = sand.u32 %s46, 1
          %s127 = smul.addr %s126, 8
          %s128 = scalar_lea.vmem [#allocation6], %s127
          %130 = vsyncadd %s125, 0
          %s131 = smul.addr %s15, 2
          %s132 = smul.addr %s131, 4
          %s133 = scalar_lea.hbm %s1, %s132
          %s135 = sshll.u32 %s133, 4
          %s136 = int_to_ptr.hbm [resolvable:$true] %s135
          %s137 = sshll.u32 %s128, 4
          %s138 = int_to_ptr.vmem [resolvable:$true] %s137
          %140 = dma.hbm_to_vmem [thread:$0]  %s136, 128, %s138, %s125
        $region24: #{tpu_custom_call.1} parent=19 // pred_fallthru
          _
      $region20: #{tpu_custom_call.1} parent=5 // pred_fallthru
        _
      %p141 = scmp.le.s32.totalorder 1, %s15
      %p142 = scmp.lt.s32.totalorder %s15, 3
      %p143 = pnand %p141, %p142
      %p144 = pneg %p143
      // Predicated region
      $region25: #{tpu_custom_call.1} parent=5 // pred_check
        _
      $region26: #{tpu_custom_call.1} parent=5 // pred_check_branch
        %146 = sbr.rel (%p143) target = $region28
      $region27: #{tpu_custom_call.1} parent=5 // pred_region
        %s147 = ssub.s32 %s15, 1
        // Predicated region
        $region29: #{tpu_custom_call.1} parent=27 // pred_check
          %p148 = pneg %p36
        $region30: #{tpu_custom_call.1} parent=27 // pred_check_branch
          %150 = sbr.rel (%p148) target = $region32
        $region31: #{tpu_custom_call.1} parent=27 // pred_region
          %152 = dma.done [#allocation4], 3136
        $region32: #{tpu_custom_call.1} parent=27 // pred_fallthru
          _
        %s153 = sand.u32 %s49, 1
        %s154 = scalar_lea.sflag [#allocation7], %s153
        %s155 = sand.u32 %s49, 1
        %s156 = smul.addr %s155, 8
        %s157 = scalar_lea.vmem [#allocation6], %s156
        // Predicated region
        $region33: #{tpu_custom_call.1} parent=27 // pred_check
          %p158 = pneg %p62
        $region34: #{tpu_custom_call.1} parent=27 // pred_check_branch
          %160 = sbr.rel (%p158) target = $region36
        $region35: #{tpu_custom_call.1} parent=27 // pred_region
          %162 = dma.done %s154, 128
        $region36: #{tpu_custom_call.1} parent=27 // pred_fallthru
          _
        %p163 = pneg %p36
        %p164 = pneg %p33
        %s165 = sand.u32 %s49, 1
        %s166 = scalar_lea.sflag [#allocation7], %s165
        %s167 = sand.u32 %s49, 1
        %s168 = smul.addr %s167, 8
        %s169 = scalar_lea.vmem [#allocation6], %s168
        %p170 = pneg %p62
        %p171 = pneg %p59
        %p172 = pneg %p88
        %p173 = pneg %p85
        %s174 = sand.u32 %s75, 1
        %s175 = scalar_lea.sflag [#allocation5], %s174
        %s176 = sand.u32 %s75, 1
        %s177 = smul.addr %s176, 8
        %s178 = scalar_lea.vmem [#allocation8], %s177
        %v179 = vld [vmem:[%s157] sm:$0xff]
        %181 = vst [vmem:[#allocation1] ss:$2 sm:$0xff] %v179
        %v182 = vld.sshfl [vmem:[#allocation1] sm:$0xff pattern:$0x75316420]
        %v183 = vld.sshfl [vmem:[#allocation1 + $0x8] sm:$0xff pattern:$0x75316420]
        %vm186 = vcmask 1043456
        %v187 = vsel %vm186, %v182, 0.0
        %v188 = vrot.slane %v187, 4
        %v189 = vadd.f32 %v187, %v188
        %v190 = vrot.slane %v189, 2
        %v191 = vadd.f32 %v189, %v190
        %v192 = vrot.slane %v191, 1
        %v193 = vadd.f32 %v191, %v192
        %v194 = vsel %vm186, %v183, 0.0
        %v195 = vrot.slane %v194, 4
        %v196 = vadd.f32 %v194, %v195
        %v197 = vrot.slane %v196, 2
        %v198 = vadd.f32 %v196, %v197
        %v199 = vrot.slane %v198, 1
        %v200 = vadd.f32 %v198, %v199
        %v201 = vrcp.pop 4.0
        %v202 = vmul.f32 4.0, %v201
        %v203 = vsub.f32 1.0, %v202
        %v204 = vmul.f32 %v201, %v203
        %v205 = vadd.f32 %v201, %v204
        %vm206 = vweird.f32 %v201
        %v207 = vsel %vm206, %v201, %v205
        %v208 = vmul.f32 %v193, %v207
        %v209 = vmul.f32 %v200, %v207
        %v212 = vrot.slane %v209, 7
        %vm213 = vcmask 1040384
        %v214 = vsel %vm213, %v208, %v212
        %v216 = vlaneseq
        %vm217 = vcmp.ge.s32.totalorder %v216, 0
        %vm218 = vcmp.lt.s32.totalorder %v216, 256
        %vm219 = vmand %vm217, %vm218
        %220 = vst.msk [vmem:[#allocation2] ss:$2 sm:$0x3] %vm219, %v214
        %221 = vst [vmem:[#allocation1] ss:$2 sm:$0xff] %v179
        %v222 = vld.sshfl [vmem:[#allocation1] sm:$0xff pattern:$0x75316420]
        %v223 = vld.sshfl [vmem:[#allocation1 + $0x8] sm:$0xff pattern:$0x75316420]
        %v226 = vsel %vm186, %v222, -inf
        %v227 = vrot.slane %v226, 4
        %v228 = vmax.f32 %v226, %v227
        %v229 = vrot.slane %v228, 2
        %v230 = vmax.f32 %v228, %v229
        %v231 = vrot.slane %v230, 1
        %v232 = vmax.f32 %v230, %v231
        %v233 = vsel %vm186, %v223, -inf
        %v234 = vrot.slane %v233, 4
        %v235 = vmax.f32 %v233, %v234
        %v236 = vrot.slane %v235, 2
        %v237 = vmax.f32 %v235, %v236
        %v238 = vrot.slane %v237, 1
        %v239 = vmax.f32 %v237, %v238
        %v242 = vrot.slane %v239, 7
        %v243 = vsel %vm213, %v232, %v242
        %s245 = scalar_lea.vmem [#allocation2], 1
        %246 = vst.msk [vmem:[%s245] ss:$2 sm:$0x3] %vm219, %v243
        %v247 = vld [vmem:[#allocation2] sm:$0xf]
        %249 = vst [vmem:[#allocation1] ss:$4 sm:$0xff] %v247
        %v250 = vld.sshfl [vmem:[#allocation1] sm:$0xff pattern:$0x73625140]
        %v251 = vld.sshfl [vmem:[#allocation1 + $0x8] sm:$0xff pattern:$0x73625140]
        %254 = vrot.lane.b32.xlu0 %v250, 51
        %v255 = vpop.permute.xlu0 %254
        %256 = vrot.lane.b32.xlu0 %v251, 51
        %v257 = vpop.permute.xlu0 %256
        %v258 = vlaneseq
        %v259 = vand.u32 %v258, 127
        %vm260 = vcmp.lt.s32.totalorder %v259, 51
        %v261 = vsel %vm260, %v255, %v257
        %v262 = vsel %vm260, %v257, %v255
        %v263 = vld [vmem:[#allocation3] sm:$0xf]
        %265 = vst [vmem:[#allocation1] ss:$4 sm:$0xff] %v263
        %v266 = vld.sshfl [vmem:[#allocation1] sm:$0xff pattern:$0x73625140]
        %v267 = vld.sshfl [vmem:[#allocation1 + $0x8] sm:$0xff pattern:$0x73625140]
        %v270 = vmul.f32 %v262, %v266
        %v271 = vmul.f32 %v261, %v267
        %v272 = vadd.f32 %v270, 0.0
        %v273 = vadd.f32 %v271, 0.0
        %274 = vst [vmem:[#allocation1] ss:$4 sm:$0xff] %v247
        %v275 = vld.sshfl [vmem:[#allocation1] sm:$0xff pattern:$0x73625140]
        %v276 = vld.sshfl [vmem:[#allocation1 + $0x8] sm:$0xff pattern:$0x73625140]
        %279 = vrot.lane.b32.xlu0 %v275, 50
        %v280 = vpop.permute.xlu0 %279
        %281 = vrot.lane.b32.xlu0 %v276, 50
        %v282 = vpop.permute.xlu0 %281
        %vm283 = vcmp.lt.s32.totalorder %v259, 50
        %v284 = vsel %vm283, %v280, %v282
        %v285 = vsel %vm283, %v282, %v280
        %s286 = scalar_lea.vmem [#allocation3], 4
        %v287 = vld [vmem:[%s286] sm:$0xf]
        %289 = vst [vmem:[#allocation1] ss:$4 sm:$0xff] %v287
        %v290 = vld.sshfl [vmem:[#allocation1] sm:$0xff pattern:$0x73625140]
        %v291 = vld.sshfl [vmem:[#allocation1 + $0x8] sm:$0xff pattern:$0x73625140]
        %v294 = vmul.f32 %v285, %v290
        %v295 = vmul.f32 %v284, %v291
        %v296 = vadd.f32 %v294, 0.0
        %v297 = vadd.f32 %v295, 0.0
        %298 = vst [vmem:[#allocation1] ss:$4 sm:$0xff] %v247
        %v299 = vld.sshfl [vmem:[#allocation1] sm:$0xff pattern:$0x73625140]
        %v300 = vld.sshfl [vmem:[#allocation1 + $0x8] sm:$0xff pattern:$0x73625140]
        %303 = vrot.lane.b32.xlu0 %v299, 49
        %v304 = vpop.permute.xlu0 %303
        %305 = vrot.lane.b32.xlu0 %v300, 49
        %v306 = vpop.permute.xlu0 %305
        %vm307 = vcmp.lt.s32.totalorder %v259, 49
        %v308 = vsel %vm307, %v304, %v306
        %v309 = vsel %vm307, %v306, %v304
        %s310 = scalar_lea.vmem [#allocation3], 8
        %v311 = vld [vmem:[%s310] sm:$0xf]
        %313 = vst [vmem:[#allocation1] ss:$4 sm:$0xff] %v311
        %v314 = vld.sshfl [vmem:[#allocation1] sm:$0xff pattern:$0x73625140]
        %v315 = vld.sshfl [vmem:[#allocation1 + $0x8] sm:$0xff pattern:$0x73625140]
        %v318 = vmul.f32 %v309, %v314
        %v319 = vmul.f32 %v308, %v315
        %v320 = vadd.f32 %v318, 0.0
        %v321 = vadd.f32 %v319, 0.0
        %322 = vst [vmem:[#allocation1] ss:$4 sm:$0xff] %v247
        %v323 = vld.sshfl [vmem:[#allocation1] sm:$0xff pattern:$0x73625140]
        %v324 = vld.sshfl [vmem:[#allocation1 + $0x8] sm:$0xff pattern:$0x73625140]
        %327 = vrot.lane.b32.xlu0 %v323, 48
        %v328 = vpop.permute.xlu0 %327
        %329 = vrot.lane.b32.xlu0 %v324, 48
        %v330 = vpop.permute.xlu0 %329
        %vm331 = vcmp.lt.s32.totalorder %v259, 48
        %v332 = vsel %vm331, %v328, %v330
        %v333 = vsel %vm331, %v330, %v328
        %s334 = scalar_lea.vmem [#allocation3], 12
        %v335 = vld [vmem:[%s334] sm:$0xf]
        %337 = vst [vmem:[#allocation1] ss:$4 sm:$0xff] %v335
        %v338 = vld.sshfl [vmem:[#allocation1] sm:$0xff pattern:$0x73625140]
        %v339 = vld.sshfl [vmem:[#allocation1 + $0x8] sm:$0xff pattern:$0x73625140]
        %v342 = vmul.f32 %v333, %v338
        %v343 = vmul.f32 %v332, %v339
        %v344 = vadd.f32 %v342, 0.0
        %v345 = vadd.f32 %v343, 0.0
        %346 = vst [vmem:[#allocation1] ss:$4 sm:$0xff] %v247
        %v347 = vld.sshfl [vmem:[#allocation1] sm:$0xff pattern:$0x73625140]
        %v348 = vld.sshfl [vmem:[#allocation1 + $0x8] sm:$0xff pattern:$0x73625140]
        %351 = vrot.lane.b32.xlu0 %v347, 47
        %v352 = vpop.permute.xlu0 %351
        %353 = vrot.lane.b32.xlu0 %v348, 47
        %v354 = vpop.permute.xlu0 %353
        %vm355 = vcmp.lt.s32.totalorder %v259, 47
        %v356 = vsel %vm355, %v352, %v354
        %v357 = vsel %vm355, %v354, %v352
        %s358 = scalar_lea.vmem [#allocation3], 16
        %v359 = vld [vmem:[%s358] sm:$0xf]
        %361 = vst [vmem:[#allocation1] ss:$4 sm:$0xff] %v359
        %v362 = vld.sshfl [vmem:[#allocation1] sm:$0xff pattern:$0x73625140]
        %v363 = vld.sshfl [vmem:[#allocation1 + $0x8] sm:$0xff pattern:$0x73625140]
        %v366 = vmul.f32 %v357, %v362
        %v367 = vmul.f32 %v356, %v363
        %v368 = vadd.f32 %v272, %v366
        %v369 = vadd.f32 %v273, %v367
        %370 = vst [vmem:[#allocation1] ss:$4 sm:$0xff] %v247
        %v371 = vld.sshfl [vmem:[#allocation1] sm:$0xff pattern:$0x73625140]
        %v372 = vld.sshfl [vmem:[#allocation1 + $0x8] sm:$0xff pattern:$0x73625140]
        %375 = vrot.lane.b32.xlu0 %v371, 46
        %v376 = vpop.permute.xlu0 %375
        %377 = vrot.lane.b32.xlu0 %v372, 46
        %v378 = vpop.permute.xlu0 %377
        %vm379 = vcmp.lt.s32.totalorder %v259, 46
        %v380 = vsel %vm379, %v376, %v378
        %v381 = vsel %vm379, %v378, %v376
        %s382 = scalar_lea.vmem [#allocation3], 20
        %v383 = vld [vmem:[%s382] sm:$0xf]
        %385 = vst [vmem:[#allocation1] ss:$4 sm:$0xff] %v383
        %v386 = vld.sshfl [vmem:[#allocation1] sm:$0xff pattern:$0x73625140]
        %v387 = vld.sshfl [vmem:[#allocation1 + $0x8] sm:$0xff pattern:$0x73625140]
        %v390 = vmul.f32 %v381, %v386
        %v391 = vmul.f32 %v380, %v387
        %v392 = vadd.f32 %v296, %v390
        %v393 = vadd.f32 %v297, %v391
        %394 = vst [vmem:[#allocation1] ss:$4 sm:$0xff] %v247
        %v395 = vld.sshfl [vmem:[#allocation1] sm:$0xff pattern:$0x73625140]
        %v396 = vld.sshfl [vmem:[#allocation1 + $0x8] sm:$0xff pattern:$0x73625140]
        %399 = vrot.lane.b32.xlu0 %v395, 45
        %v400 = vpop.permute.xlu0 %399
        %401 = vrot.lane.b32.xlu0 %v396, 45
        %v402 = vpop.permute.xlu0 %401
        %vm403 = vcmp.lt.s32.totalorder %v259, 45
        %v404 = vsel %vm403, %v400, %v402
        %v405 = vsel %vm403, %v402, %v400
        %s406 = scalar_lea.vmem [#allocation3], 24
        %v407 = vld [vmem:[%s406] sm:$0xf]
        %409 = vst [vmem:[#allocation1] ss:$4 sm:$0xff] %v407
        %v410 = vld.sshfl [vmem:[#allocation1] sm:$0xff pattern:$0x73625140]
        %v411 = vld.sshfl [vmem:[#allocation1 + $0x8] sm:$0xff pattern:$0x73625140]
        %v414 = vmul.f32 %v405, %v410
        %v415 = vmul.f32 %v404, %v411
        %v416 = vadd.f32 %v320, %v414
        %v417 = vadd.f32 %v321, %v415
        %418 = vst [vmem:[#allocation1] ss:$4 sm:$0xff] %v247
        %v419 = vld.sshfl [vmem:[#allocation1] sm:$0xff pattern:$0x73625140]
        %v420 = vld.sshfl [vmem:[#allocation1 + $0x8] sm:$0xff pattern:$0x73625140]
        %423 = vrot.lane.b32.xlu0 %v419, 35
        %v424 = vpop.permute.xlu0 %423
        %425 = vrot.lane.b32.xlu0 %v420, 35
        %v426 = vpop.permute.xlu0 %425
        %vm427 = vcmp.lt.s32.totalorder %v259, 35
        %v428 = vsel %vm427, %v424, %v426
        %v429 = vsel %vm427, %v426, %v424
        %s430 = scalar_lea.vmem [#allocation3], 28
        %v431 = vld [vmem:[%s430] sm:$0xf]
        %433 = vst [vmem:[#allocation1] ss:$4 sm:$0xff] %v431
        %v434 = vld.sshfl [vmem:[#allocation1] sm:$0xff pattern:$0x73625140]
        %v435 = vld.sshfl [vmem:[#allocation1 + $0x8] sm:$0xff pattern:$0x73625140]
        %v438 = vmul.f32 %v429, %v434
        %v439 = vmul.f32 %v428, %v435
        %v440 = vadd.f32 %v344, %v438
        %v441 = vadd.f32 %v345, %v439
        %442 = vst [vmem:[#allocation1] ss:$4 sm:$0xff] %v247
        %v443 = vld.sshfl [vmem:[#allocation1] sm:$0xff pattern:$0x73625140]
        %v444 = vld.sshfl [vmem:[#allocation1 + $0x8] sm:$0xff pattern:$0x73625140]
        %447 = vrot.lane.b32.xlu0 %v443, 34
        %v448 = vpop.permute.xlu0 %447
        %449 = vrot.lane.b32.xlu0 %v444, 34
        %v450 = vpop.permute.xlu0 %449
        %vm451 = vcmp.lt.s32.totalorder %v259, 34
        %v452 = vsel %vm451, %v448, %v450
        %v453 = vsel %vm451, %v450, %v448
        %s454 = scalar_lea.vmem [#allocation3], 32
        %v455 = vld [vmem:[%s454] sm:$0xf]
        %457 = vst [vmem:[#allocation1] ss:$4 sm:$0xff] %v455
        %v458 = vld.sshfl [vmem:[#allocation1] sm:$0xff pattern:$0x73625140]
        %v459 = vld.sshfl [vmem:[#allocation1 + $0x8] sm:$0xff pattern:$0x73625140]
        %v462 = vmul.f32 %v453, %v458
        %v463 = vmul.f32 %v452, %v459
        %v464 = vadd.f32 %v368, %v462
        %v465 = vadd.f32 %v369, %v463
        %466 = vst [vmem:[#allocation1] ss:$4 sm:$0xff] %v247
        %v467 = vld.sshfl [vmem:[#allocation1] sm:$0xff pattern:$0x73625140]
        %v468 = vld.sshfl [vmem:[#allocation1 + $0x8] sm:$0xff pattern:$0x73625140]
        %471 = vrot.lane.b32.xlu0 %v467, 33
        %v472 = vpop.permute.xlu0 %471
        %473 = vrot.lane.b32.xlu0 %v468, 33
        %v474 = vpop.permute.xlu0 %473
        %vm475 = vcmp.lt.s32.totalorder %v259, 33
        %v476 = vsel %vm475, %v472, %v474
        %v477 = vsel %vm475, %v474, %v472
        %s478 = scalar_lea.vmem [#allocation3], 36
        %v479 = vld [vmem:[%s478] sm:$0xf]
        %481 = vst [vmem:[#allocation1] ss:$4 sm:$0xff] %v479
        %v482 = vld.sshfl [vmem:[#allocation1] sm:$0xff pattern:$0x73625140]
        %v483 = vld.sshfl [vmem:[#allocation1 + $0x8] sm:$0xff pattern:$0x73625140]
        %v486 = vmul.f32 %v477, %v482
        %v487 = vmul.f32 %v476, %v483
        %v488 = vadd.f32 %v392, %v486
        %v489 = vadd.f32 %v393, %v487
        %490 = vst [vmem:[#allocation1] ss:$4 sm:$0xff] %v247
        %v491 = vld.sshfl [vmem:[#allocation1] sm:$0xff pattern:$0x73625140]
        %v492 = vld.sshfl [vmem:[#allocation1 + $0x8] sm:$0xff pattern:$0x73625140]
        %495 = vrot.lane.b32.xlu0 %v491, 32
        %v496 = vpop.permute.xlu0 %495
        %497 = vrot.lane.b32.xlu0 %v492, 32
        %v498 = vpop.permute.xlu0 %497
        %vm499 = vcmp.lt.s32.totalorder %v259, 32
        %v500 = vsel %vm499, %v496, %v498
        %v501 = vsel %vm499, %v498, %v496
        %s502 = scalar_lea.vmem [#allocation3], 40
        %v503 = vld [vmem:[%s502] sm:$0xf]
        %505 = vst [vmem:[#allocation1] ss:$4 sm:$0xff] %v503
        %v506 = vld.sshfl [vmem:[#allocation1] sm:$0xff pattern:$0x73625140]
        %v507 = vld.sshfl [vmem:[#allocation1 + $0x8] sm:$0xff pattern:$0x73625140]
        %v510 = vmul.f32 %v501, %v506
        %v511 = vmul.f32 %v500, %v507
        %v512 = vadd.f32 %v416, %v510
        %v513 = vadd.f32 %v417, %v511
        %514 = vst [vmem:[#allocation1] ss:$4 sm:$0xff] %v247
        %v515 = vld.sshfl [vmem:[#allocation1] sm:$0xff pattern:$0x73625140]
        %v516 = vld.sshfl [vmem:[#allocation1 + $0x8] sm:$0xff pattern:$0x73625140]
        %519 = vrot.lane.b32.xlu0 %v515, 31
        %v520 = vpop.permute.xlu0 %519
        %521 = vrot.lane.b32.xlu0 %v516, 31
        %v522 = vpop.permute.xlu0 %521
        %vm523 = vcmp.lt.s32.totalorder %v259, 31
        %v524 = vsel %vm523, %v520, %v522
        %v525 = vsel %vm523, %v522, %v520
        %s526 = scalar_lea.vmem [#allocation3], 44
        %v527 = vld [vmem:[%s526] sm:$0xf]
        %529 = vst [vmem:[#allocation1] ss:$4 sm:$0xff] %v527
        %v530 = vld.sshfl [vmem:[#allocation1] sm:$0xff pattern:$0x73625140]
        %v531 = vld.sshfl [vmem:[#allocation1 + $0x8] sm:$0xff pattern:$0x73625140]
        %v534 = vmul.f32 %v525, %v530
        %v535 = vmul.f32 %v524, %v531
        %v536 = vadd.f32 %v440, %v534
        %v537 = vadd.f32 %v441, %v535
        %538 = vst [vmem:[#allocation1] ss:$4 sm:$0xff] %v247
        %v539 = vld.sshfl [vmem:[#allocation1] sm:$0xff pattern:$0x73625140]
        %v540 = vld.sshfl [vmem:[#allocation1 + $0x8] sm:$0xff pattern:$0x73625140]
        %543 = vrot.lane.b32.xlu0 %v539, 30
        %v544 = vpop.permute.xlu0 %543
        %545 = vrot.lane.b32.xlu0 %v540, 30
        %v546 = vpop.permute.xlu0 %545
        %vm547 = vcmp.lt.s32.totalorder %v259, 30
        %v548 = vsel %vm547, %v544, %v546
        %v549 = vsel %vm547, %v546, %v544
        %s550 = scalar_lea.vmem [#allocation3], 48
        %v551 = vld [vmem:[%s550] sm:$0xf]
        %553 = vst [vmem:[#allocation1] ss:$4 sm:$0xff] %v551
        %v554 = vld.sshfl [vmem:[#allocation1] sm:$0xff pattern:$0x73625140]
        %v555 = vld.sshfl [vmem:[#allocation1 + $0x8] sm:$0xff pattern:$0x73625140]
        %v558 = vmul.f32 %v549, %v554
        %v559 = vmul.f32 %v548, %v555
        %v560 = vadd.f32 %v464, %v558
        %v561 = vadd.f32 %v465, %v559
        %562 = vst [vmem:[#allocation1] ss:$4 sm:$0xff] %v247
        %v563 = vld.sshfl [vmem:[#allocation1] sm:$0xff pattern:$0x73625140]
        %v564 = vld.sshfl [vmem:[#allocation1 + $0x8] sm:$0xff pattern:$0x73625140]
        %567 = vrot.lane.b32.xlu0 %v563, 29
        %v568 = vpop.permute.xlu0 %567
        %569 = vrot.lane.b32.xlu0 %v564, 29
        %v570 = vpop.permute.xlu0 %569
        %vm571 = vcmp.lt.s32.totalorder %v259, 29
        %v572 = vsel %vm571, %v568, %v570
        %v573 = vsel %vm571, %v570, %v568
        %s574 = scalar_lea.vmem [#allocation3], 52
        %v575 = vld [vmem:[%s574] sm:$0xf]
        %577 = vst [vmem:[#allocation1] ss:$4 sm:$0xff] %v575
        %v578 = vld.sshfl [vmem:[#allocation1] sm:$0xff pattern:$0x73625140]
        %v579 = vld.sshfl [vmem:[#allocation1 + $0x8] sm:$0xff pattern:$0x73625140]
        %v582 = vmul.f32 %v573, %v578
        %v583 = vmul.f32 %v572, %v579
        %v584 = vadd.f32 %v488, %v582
        %v585 = vadd.f32 %v489, %v583
        %586 = vst [vmem:[#allocation1] ss:$4 sm:$0xff] %v247
        %v587 = vld.sshfl [vmem:[#allocation1] sm:$0xff pattern:$0x73625140]
        %v588 = vld.sshfl [vmem:[#allocation1 + $0x8] sm:$0xff pattern:$0x73625140]
        %591 = vrot.lane.b32.xlu0 %v587, 19
        %v592 = vpop.permute.xlu0 %591
        %593 = vrot.lane.b32.xlu0 %v588, 19
        %v594 = vpop.permute.xlu0 %593
        %vm595 = vcmp.lt.s32.totalorder %v259, 19
        %v596 = vsel %vm595, %v592, %v594
        %v597 = vsel %vm595, %v594, %v592
        %s598 = scalar_lea.vmem [#allocation3], 56
        %v599 = vld [vmem:[%s598] sm:$0xf]
        %601 = vst [vmem:[#allocation1] ss:$4 sm:$0xff] %v599
        %v602 = vld.sshfl [vmem:[#allocation1] sm:$0xff pattern:$0x73625140]
        %v603 = vld.sshfl [vmem:[#allocation1 + $0x8] sm:$0xff pattern:$0x73625140]
        %v606 = vmul.f32 %v597, %v602
        %v607 = vmul.f32 %v596, %v603
        %v608 = vadd.f32 %v512, %v606
        %v609 = vadd.f32 %v513, %v607
        %610 = vst [vmem:[#allocation1] ss:$4 sm:$0xff] %v247
        %v611 = vld.sshfl [vmem:[#allocation1] sm:$0xff pattern:$0x73625140]
        %v612 = vld.sshfl [vmem:[#allocation1 + $0x8] sm:$0xff pattern:$0x73625140]
        %615 = vrot.lane.b32.xlu0 %v611, 18
        %v616 = vpop.permute.xlu0 %615
        %617 = vrot.lane.b32.xlu0 %v612, 18
        %v618 = vpop.permute.xlu0 %617
        %vm619 = vcmp.lt.s32.totalorder %v259, 18
        %v620 = vsel %vm619, %v616, %v618
        %v621 = vsel %vm619, %v618, %v616
        %s622 = scalar_lea.vmem [#allocation3], 60
        %v623 = vld [vmem:[%s622] sm:$0xf]
        %625 = vst [vmem:[#allocation1] ss:$4 sm:$0xff] %v623
        %v626 = vld.sshfl [vmem:[#allocation1] sm:$0xff pattern:$0x73625140]
        %v627 = vld.sshfl [vmem:[#allocation1 + $0x8] sm:$0xff pattern:$0x73625140]
        %v630 = vmul.f32 %v621, %v626
        %v631 = vmul.f32 %v620, %v627
        %v632 = vadd.f32 %v536, %v630
        %v633 = vadd.f32 %v537, %v631
        %634 = vst [vmem:[#allocation1] ss:$4 sm:$0xff] %v247
        %v635 = vld.sshfl [vmem:[#allocation1] sm:$0xff pattern:$0x73625140]
        %v636 = vld.sshfl [vmem:[#allocation1 + $0x8] sm:$0xff pattern:$0x73625140]
        %639 = vrot.lane.b32.xlu0 %v635, 17
        %v640 = vpop.permute.xlu0 %639
        %641 = vrot.lane.b32.xlu0 %v636, 17
        %v642 = vpop.permute.xlu0 %641
        %vm643 = vcmp.lt.s32.totalorder %v259, 17
        %v644 = vsel %vm643, %v640, %v642
        %v645 = vsel %vm643, %v642, %v640
        %s646 = scalar_lea.vmem [#allocation3], 64
        %v647 = vld [vmem:[%s646] sm:$0xf]
        %649 = vst [vmem:[#allocation1] ss:$4 sm:$0xff] %v647
        %v650 = vld.sshfl [vmem:[#allocation1] sm:$0xff pattern:$0x73625140]
        %v651 = vld.sshfl [vmem:[#allocation1 + $0x8] sm:$0xff pattern:$0x73625140]
        %v654 = vmul.f32 %v645, %v650
        %v655 = vmul.f32 %v644, %v651
        %v656 = vadd.f32 %v560, %v654
        %v657 = vadd.f32 %v561, %v655
        %658 = vst [vmem:[#allocation1] ss:$4 sm:$0xff] %v247
        %v659 = vld.sshfl [vmem:[#allocation1] sm:$0xff pattern:$0x73625140]
        %v660 = vld.sshfl [vmem:[#allocation1 + $0x8] sm:$0xff pattern:$0x73625140]
        %663 = vrot.lane.b32.xlu0 %v659, 16
        %v664 = vpop.permute.xlu0 %663
        %665 = vrot.lane.b32.xlu0 %v660, 16
        %v666 = vpop.permute.xlu0 %665
        %vm667 = vcmp.lt.s32.totalorder %v259, 16
        %v668 = vsel %vm667, %v664, %v666
        %v669 = vsel %vm667, %v666, %v664
        %s670 = scalar_lea.vmem [#allocation3], 68
        %v671 = vld [vmem:[%s670] sm:$0xf]
        %673 = vst [vmem:[#allocation1] ss:$4 sm:$0xff] %v671
        %v674 = vld.sshfl [vmem:[#allocation1] sm:$0xff pattern:$0x73625140]
        %v675 = vld.sshfl [vmem:[#allocation1 + $0x8] sm:$0xff pattern:$0x73625140]
        %v678 = vmul.f32 %v669, %v674
        %v679 = vmul.f32 %v668, %v675
        %v680 = vadd.f32 %v584, %v678
        %v681 = vadd.f32 %v585, %v679
        %682 = vst [vmem:[#allocation1] ss:$4 sm:$0xff] %v247
        %v683 = vld.sshfl [vmem:[#allocation1] sm:$0xff pattern:$0x73625140]
        %v684 = vld.sshfl [vmem:[#allocation1 + $0x8] sm:$0xff pattern:$0x73625140]
        %687 = vrot.lane.b32.xlu0 %v683, 15
        %v688 = vpop.permute.xlu0 %687
        %689 = vrot.lane.b32.xlu0 %v684, 15
        %v690 = vpop.permute.xlu0 %689
        %vm691 = vcmp.lt.s32.totalorder %v259, 15
        %v692 = vsel %vm691, %v688, %v690
        %v693 = vsel %vm691, %v690, %v688
        %s694 = scalar_lea.vmem [#allocation3], 72
        %v695 = vld [vmem:[%s694] sm:$0xf]
        %697 = vst [vmem:[#allocation1] ss:$4 sm:$0xff] %v695
        %v698 = vld.sshfl [vmem:[#allocation1] sm:$0xff pattern:$0x73625140]
        %v699 = vld.sshfl [vmem:[#allocation1 + $0x8] sm:$0xff pattern:$0x73625140]
        %v702 = vmul.f32 %v693, %v698
        %v703 = vmul.f32 %v692, %v699
        %v704 = vadd.f32 %v608, %v702
        %v705 = vadd.f32 %v609, %v703
        %706 = vst [vmem:[#allocation1] ss:$4 sm:$0xff] %v247
        %v707 = vld.sshfl [vmem:[#allocation1] sm:$0xff pattern:$0x73625140]
        %v708 = vld.sshfl [vmem:[#allocation1 + $0x8] sm:$0xff pattern:$0x73625140]
        %711 = vrot.lane.b32.xlu0 %v707, 14
        %v712 = vpop.permute.xlu0 %711
        %713 = vrot.lane.b32.xlu0 %v708, 14
        %v714 = vpop.permute.xlu0 %713
        %vm715 = vcmp.lt.s32.totalorder %v259, 14
        %v716 = vsel %vm715, %v712, %v714
        %v717 = vsel %vm715, %v714, %v712
        %s718 = scalar_lea.vmem [#allocation3], 76
        %v719 = vld [vmem:[%s718] sm:$0xf]
        %721 = vst [vmem:[#allocation1] ss:$4 sm:$0xff] %v719
        %v722 = vld.sshfl [vmem:[#allocation1] sm:$0xff pattern:$0x73625140]
        %v723 = vld.sshfl [vmem:[#allocation1 + $0x8] sm:$0xff pattern:$0x73625140]
        %v726 = vmul.f32 %v717, %v722
        %v727 = vmul.f32 %v716, %v723
        %v728 = vadd.f32 %v632, %v726
        %v729 = vadd.f32 %v633, %v727
        %730 = vst [vmem:[#allocation1] ss:$4 sm:$0xff] %v247
        %v731 = vld.sshfl [vmem:[#allocation1] sm:$0xff pattern:$0x73625140]
        %v732 = vld.sshfl [vmem:[#allocation1 + $0x8] sm:$0xff pattern:$0x73625140]
        %735 = vrot.lane.b32.xlu0 %v731, 13
        %v736 = vpop.permute.xlu0 %735
        %737 = vrot.lane.b32.xlu0 %v732, 13
        %v738 = vpop.permute.xlu0 %737
        %vm739 = vcmp.lt.s32.totalorder %v259, 13
        %v740 = vsel %vm739, %v736, %v738
        %v741 = vsel %vm739, %v738, %v736
        %s742 = scalar_lea.vmem [#allocation3], 80
        %v743 = vld [vmem:[%s742] sm:$0xf]
        %745 = vst [vmem:[#allocation1] ss:$4 sm:$0xff] %v743
        %v746 = vld.sshfl [vmem:[#allocation1] sm:$0xff pattern:$0x73625140]
        %v747 = vld.sshfl [vmem:[#allocation1 + $0x8] sm:$0xff pattern:$0x73625140]
        %v750 = vmul.f32 %v741, %v746
        %v751 = vmul.f32 %v740, %v747
        %v752 = vadd.f32 %v656, %v750
        %v753 = vadd.f32 %v657, %v751
        %754 = vst [vmem:[#allocation1] ss:$4 sm:$0xff] %v247
        %v755 = vld.sshfl [vmem:[#allocation1] sm:$0xff pattern:$0x73625140]
        %v756 = vld.sshfl [vmem:[#allocation1 + $0x8] sm:$0xff pattern:$0x73625140]
        %759 = vrot.lane.b32.xlu0 %v755, 3
        %v760 = vpop.permute.xlu0 %759
        %761 = vrot.lane.b32.xlu0 %v756, 3
        %v762 = vpop.permute.xlu0 %761
        %vm763 = vcmp.lt.s32.totalorder %v259, 3
        %v764 = vsel %vm763, %v760, %v762
        %v765 = vsel %vm763, %v762, %v760
        %s766 = scalar_lea.vmem [#allocation3], 84
        %v767 = vld [vmem:[%s766] sm:$0xf]
        %769 = vst [vmem:[#allocation1] ss:$4 sm:$0xff] %v767
        %v770 = vld.sshfl [vmem:[#allocation1] sm:$0xff pattern:$0x73625140]
        %v771 = vld.sshfl [vmem:[#allocation1 + $0x8] sm:$0xff pattern:$0x73625140]
        %v774 = vmul.f32 %v765, %v770
        %v775 = vmul.f32 %v764, %v771
        %v776 = vadd.f32 %v680, %v774
        %v777 = vadd.f32 %v681, %v775
        %778 = vst [vmem:[#allocation1] ss:$4 sm:$0xff] %v247
        %v779 = vld.sshfl [vmem:[#allocation1] sm:$0xff pattern:$0x73625140]
        %v780 = vld.sshfl [vmem:[#allocation1 + $0x8] sm:$0xff pattern:$0x73625140]
        %783 = vrot.lane.b32.xlu0 %v779, 2
        %v784 = vpop.permute.xlu0 %783
        %785 = vrot.lane.b32.xlu0 %v780, 2
        %v786 = vpop.permute.xlu0 %785
        %vm787 = vcmp.lt.s32.totalorder %v259, 2
        %v788 = vsel %vm787, %v784, %v786
        %v789 = vsel %vm787, %v786, %v784
        %s790 = scalar_lea.vmem [#allocation3], 88
        %v791 = vld [vmem:[%s790] sm:$0xf]
        %793 = vst [vmem:[#allocation1] ss:$4 sm:$0xff] %v791
        %v794 = vld.sshfl [vmem:[#allocation1] sm:$0xff pattern:$0x73625140]
        %v795 = vld.sshfl [vmem:[#allocation1 + $0x8] sm:$0xff pattern:$0x73625140]
        %v798 = vmul.f32 %v789, %v794
        %v799 = vmul.f32 %v788, %v795
        %v800 = vadd.f32 %v704, %v798
        %v801 = vadd.f32 %v705, %v799
        %802 = vst [vmem:[#allocation1] ss:$4 sm:$0xff] %v247
        %v803 = vld.sshfl [vmem:[#allocation1] sm:$0xff pattern:$0x73625140]
        %v804 = vld.sshfl [vmem:[#allocation1 + $0x8] sm:$0xff pattern:$0x73625140]
        %807 = vrot.lane.b32.xlu0 %v803, 1
        %v808 = vpop.permute.xlu0 %807
        %809 = vrot.lane.b32.xlu0 %v804, 1
        %v810 = vpop.permute.xlu0 %809
        %vm811 = vcmp.lt.s32.totalorder %v259, 1
        %v812 = vsel %vm811, %v808, %v810
        %v813 = vsel %vm811, %v810, %v808
        %s814 = scalar_lea.vmem [#allocation3], 92
        %v815 = vld [vmem:[%s814] sm:$0xf]
        %817 = vst [vmem:[#allocation1] ss:$4 sm:$0xff] %v815
        %v818 = vld.sshfl [vmem:[#allocation1] sm:$0xff pattern:$0x73625140]
        %v819 = vld.sshfl [vmem:[#allocation1 + $0x8] sm:$0xff pattern:$0x73625140]
        %v822 = vmul.f32 %v813, %v818
        %v823 = vmul.f32 %v812, %v819
        %v824 = vadd.f32 %v728, %v822
        %v825 = vadd.f32 %v729, %v823
        %s826 = scalar_lea.vmem [#allocation3], 96
        %v827 = vld [vmem:[%s826] sm:$0xf]
        %v828 = vmul.f32 %v247, %v827
        %830 = vst [vmem:[#allocation1] ss:$4 sm:$0xff] %v828
        %v831 = vld.sshfl [vmem:[#allocation1] sm:$0xff pattern:$0x73625140]
        %v832 = vld.sshfl [vmem:[#allocation1 + $0x8] sm:$0xff pattern:$0x73625140]
        %v835 = vadd.f32 %v752, %v831
        %v836 = vadd.f32 %v753, %v832
        %837 = vst [vmem:[#allocation1] ss:$4 sm:$0xff] %v247
        %v838 = vld.sshfl [vmem:[#allocation1] sm:$0xff pattern:$0x73625140]
        %v839 = vld.sshfl [vmem:[#allocation1 + $0x8] sm:$0xff pattern:$0x73625140]
        %842 = vrot.lane.b32.xlu0 %v838, 127
        %v843 = vpop.permute.xlu0 %842
        %844 = vrot.lane.b32.xlu0 %v839, 127
        %v845 = vpop.permute.xlu0 %844
        %vm846 = vcmp.lt.s32.totalorder %v259, 127
        %v847 = vsel %vm846, %v843, %v845
        %v848 = vsel %vm846, %v845, %v843
        %s849 = scalar_lea.vmem [#allocation3], 100
        %v850 = vld [vmem:[%s849] sm:$0xf]
        %852 = vst [vmem:[#allocation1] ss:$4 sm:$0xff] %v850
        %v853 = vld.sshfl [vmem:[#allocation1] sm:$0xff pattern:$0x73625140]
        %v854 = vld.sshfl [vmem:[#allocation1 + $0x8] sm:$0xff pattern:$0x73625140]
        %v857 = vmul.f32 %v847, %v853
        %v858 = vmul.f32 %v848, %v854
        %v859 = vadd.f32 %v776, %v857
        %v860 = vadd.f32 %v777, %v858
        %861 = vst [vmem:[#allocation1] ss:$4 sm:$0xff] %v247
        %v862 = vld.sshfl [vmem:[#allocation1] sm:$0xff pattern:$0x73625140]
        %v863 = vld.sshfl [vmem:[#allocation1 + $0x8] sm:$0xff pattern:$0x73625140]
        %866 = vrot.lane.b32.xlu0 %v862, 126
        %v867 = vpop.permute.xlu0 %866
        %868 = vrot.lane.b32.xlu0 %v863, 126
        %v869 = vpop.permute.xlu0 %868
        %vm870 = vcmp.lt.s32.totalorder %v259, 126
        %v871 = vsel %vm870, %v867, %v869
        %v872 = vsel %vm870, %v869, %v867
        %s873 = scalar_lea.vmem [#allocation3], 104
        %v874 = vld [vmem:[%s873] sm:$0xf]
        %876 = vst [vmem:[#allocation1] ss:$4 sm:$0xff] %v874
        %v877 = vld.sshfl [vmem:[#allocation1] sm:$0xff pattern:$0x73625140]
        %v878 = vld.sshfl [vmem:[#allocation1 + $0x8] sm:$0xff pattern:$0x73625140]
        %v881 = vmul.f32 %v871, %v877
        %v882 = vmul.f32 %v872, %v878
        %v883 = vadd.f32 %v800, %v881
        %v884 = vadd.f32 %v801, %v882
        %885 = vst [vmem:[#allocation1] ss:$4 sm:$0xff] %v247
        %v886 = vld.sshfl [vmem:[#allocation1] sm:$0xff pattern:$0x73625140]
        %v887 = vld.sshfl [vmem:[#allocation1 + $0x8] sm:$0xff pattern:$0x73625140]
        %890 = vrot.lane.b32.xlu0 %v886, 125
        %v891 = vpop.permute.xlu0 %890
        %892 = vrot.lane.b32.xlu0 %v887, 125
        %v893 = vpop.permute.xlu0 %892
        %vm894 = vcmp.lt.s32.totalorder %v259, 125
        %v895 = vsel %vm894, %v891, %v893
        %v896 = vsel %vm894, %v893, %v891
        %s897 = scalar_lea.vmem [#allocation3], 108
        %v898 = vld [vmem:[%s897] sm:$0xf]
        %900 = vst [vmem:[#allocation1] ss:$4 sm:$0xff] %v898
        %v901 = vld.sshfl [vmem:[#allocation1] sm:$0xff pattern:$0x73625140]
        %v902 = vld.sshfl [vmem:[#allocation1 + $0x8] sm:$0xff pattern:$0x73625140]
        %v905 = vmul.f32 %v895, %v901
        %v906 = vmul.f32 %v896, %v902
        %v907 = vadd.f32 %v824, %v905
        %v908 = vadd.f32 %v825, %v906
        %909 = vst [vmem:[#allocation1] ss:$4 sm:$0xff] %v247
        %v910 = vld.sshfl [vmem:[#allocation1] sm:$0xff pattern:$0x73625140]
        %v911 = vld.sshfl [vmem:[#allocation1 + $0x8] sm:$0xff pattern:$0x73625140]
        %914 = vrot.lane.b32.xlu0 %v910, 115
        %v915 = vpop.permute.xlu0 %914
        %916 = vrot.lane.b32.xlu0 %v911, 115
        %v917 = vpop.permute.xlu0 %916
        %vm918 = vcmp.lt.s32.totalorder %v259, 115
        %v919 = vsel %vm918, %v915, %v917
        %v920 = vsel %vm918, %v917, %v915
        %s921 = scalar_lea.vmem [#allocation3], 112
        %v922 = vld [vmem:[%s921] sm:$0xf]
        %924 = vst [vmem:[#allocation1] ss:$4 sm:$0xff] %v922
        %v925 = vld.sshfl [vmem:[#allocation1] sm:$0xff pattern:$0x73625140]
        %v926 = vld.sshfl [vmem:[#allocation1 + $0x8] sm:$0xff pattern:$0x73625140]
        %v929 = vmul.f32 %v919, %v925
        %v930 = vmul.f32 %v920, %v926
        %v931 = vadd.f32 %v835, %v929
        %v932 = vadd.f32 %v836, %v930
        %933 = vst [vmem:[#allocation1] ss:$4 sm:$0xff] %v247
        %v934 = vld.sshfl [vmem:[#allocation1] sm:$0xff pattern:$0x73625140]
        %v935 = vld.sshfl [vmem:[#allocation1 + $0x8] sm:$0xff pattern:$0x73625140]
        %938 = vrot.lane.b32.xlu0 %v934, 114
        %v939 = vpop.permute.xlu0 %938
        %940 = vrot.lane.b32.xlu0 %v935, 114
        %v941 = vpop.permute.xlu0 %940
        %vm942 = vcmp.lt.s32.totalorder %v259, 114
        %v943 = vsel %vm942, %v939, %v941
        %v944 = vsel %vm942, %v941, %v939
        %s945 = scalar_lea.vmem [#allocation3], 116
        %v946 = vld [vmem:[%s945] sm:$0xf]
        %948 = vst [vmem:[#allocation1] ss:$4 sm:$0xff] %v946
        %v949 = vld.sshfl [vmem:[#allocation1] sm:$0xff pattern:$0x73625140]
        %v950 = vld.sshfl [vmem:[#allocation1 + $0x8] sm:$0xff pattern:$0x73625140]
        %v953 = vmul.f32 %v943, %v949
        %v954 = vmul.f32 %v944, %v950
        %v955 = vadd.f32 %v859, %v953
        %v956 = vadd.f32 %v860, %v954
        %957 = vst [vmem:[#allocation1] ss:$4 sm:$0xff] %v247
        %v958 = vld.sshfl [vmem:[#allocation1] sm:$0xff pattern:$0x73625140]
        %v959 = vld.sshfl [vmem:[#allocation1 + $0x8] sm:$0xff pattern:$0x73625140]
        %962 = vrot.lane.b32.xlu0 %v958, 113
        %v963 = vpop.permute.xlu0 %962
        %964 = vrot.lane.b32.xlu0 %v959, 113
        %v965 = vpop.permute.xlu0 %964
        %vm966 = vcmp.lt.s32.totalorder %v259, 113
        %v967 = vsel %vm966, %v963, %v965
        %v968 = vsel %vm966, %v965, %v963
        %s969 = scalar_lea.vmem [#allocation3], 120
        %v970 = vld [vmem:[%s969] sm:$0xf]
        %972 = vst [vmem:[#allocation1] ss:$4 sm:$0xff] %v970
        %v973 = vld.sshfl [vmem:[#allocation1] sm:$0xff pattern:$0x73625140]
        %v974 = vld.sshfl [vmem:[#allocation1 + $0x8] sm:$0xff pattern:$0x73625140]
        %v977 = vmul.f32 %v967, %v973
        %v978 = vmul.f32 %v968, %v974
        %v979 = vadd.f32 %v883, %v977
        %v980 = vadd.f32 %v884, %v978
        %981 = vst [vmem:[#allocation1] ss:$4 sm:$0xff] %v247
        %v982 = vld.sshfl [vmem:[#allocation1] sm:$0xff pattern:$0x73625140]
        %v983 = vld.sshfl [vmem:[#allocation1 + $0x8] sm:$0xff pattern:$0x73625140]
        %986 = vrot.lane.b32.xlu0 %v982, 112
        %v987 = vpop.permute.xlu0 %986
        %988 = vrot.lane.b32.xlu0 %v983, 112
        %v989 = vpop.permute.xlu0 %988
        %vm990 = vcmp.lt.s32.totalorder %v259, 112
        %v991 = vsel %vm990, %v987, %v989
        %v992 = vsel %vm990, %v989, %v987
        %s993 = scalar_lea.vmem [#allocation3], 124
        %v994 = vld [vmem:[%s993] sm:$0xf]
        %996 = vst [vmem:[#allocation1] ss:$4 sm:$0xff] %v994
        %v997 = vld.sshfl [vmem:[#allocation1] sm:$0xff pattern:$0x73625140]
        %v998 = vld.sshfl [vmem:[#allocation1 + $0x8] sm:$0xff pattern:$0x73625140]
        %v1001 = vmul.f32 %v991, %v997
        %v1002 = vmul.f32 %v992, %v998
        %v1003 = vadd.f32 %v907, %v1001
        %v1004 = vadd.f32 %v908, %v1002
        %1005 = vst [vmem:[#allocation1] ss:$4 sm:$0xff] %v247
        %v1006 = vld.sshfl [vmem:[#allocation1] sm:$0xff pattern:$0x73625140]
        %v1007 = vld.sshfl [vmem:[#allocation1 + $0x8] sm:$0xff pattern:$0x73625140]
        %1010 = vrot.lane.b32.xlu0 %v1006, 111
        %v1011 = vpop.permute.xlu0 %1010
        %1012 = vrot.lane.b32.xlu0 %v1007, 111
        %v1013 = vpop.permute.xlu0 %1012
        %vm1014 = vcmp.lt.s32.totalorder %v259, 111
        %v1015 = vsel %vm1014, %v1011, %v1013
        %v1016 = vsel %vm1014, %v1013, %v1011
        %s1017 = scalar_lea.vmem [#allocation3], 128
        %v1018 = vld [vmem:[%s1017] sm:$0xf]
        %1020 = vst [vmem:[#allocation1] ss:$4 sm:$0xff] %v1018
        %v1021 = vld.sshfl [vmem:[#allocation1] sm:$0xff pattern:$0x73625140]
        %v1022 = vld.sshfl [vmem:[#allocation1 + $0x8] sm:$0xff pattern:$0x73625140]
        %v1025 = vmul.f32 %v1015, %v1021
        %v1026 = vmul.f32 %v1016, %v1022
        %v1027 = vadd.f32 %v931, %v1025
        %v1028 = vadd.f32 %v932, %v1026
        %1029 = vst [vmem:[#allocation1] ss:$4 sm:$0xff] %v247
        %v1030 = vld.sshfl [vmem:[#allocation1] sm:$0xff pattern:$0x73625140]
        %v1031 = vld.sshfl [vmem:[#allocation1 + $0x8] sm:$0xff pattern:$0x73625140]
        %1034 = vrot.lane.b32.xlu0 %v1030, 110
        %v1035 = vpop.permute.xlu0 %1034
        %1036 = vrot.lane.b32.xlu0 %v1031, 110
        %v1037 = vpop.permute.xlu0 %1036
        %vm1038 = vcmp.lt.s32.totalorder %v259, 110
        %v1039 = vsel %vm1038, %v1035, %v1037
        %v1040 = vsel %vm1038, %v1037, %v1035
        %s1041 = scalar_lea.vmem [#allocation3], 132
        %v1042 = vld [vmem:[%s1041] sm:$0xf]
        %1044 = vst [vmem:[#allocation1] ss:$4 sm:$0xff] %v1042
        %v1045 = vld.sshfl [vmem:[#allocation1] sm:$0xff pattern:$0x73625140]
        %v1046 = vld.sshfl [vmem:[#allocation1 + $0x8] sm:$0xff pattern:$0x73625140]
        %v1049 = vmul.f32 %v1039, %v1045
        %v1050 = vmul.f32 %v1040, %v1046
        %v1051 = vadd.f32 %v955, %v1049
        %v1052 = vadd.f32 %v956, %v1050
        %1053 = vst [vmem:[#allocation1] ss:$4 sm:$0xff] %v247
        %v1054 = vld.sshfl [vmem:[#allocation1] sm:$0xff pattern:$0x73625140]
        %v1055 = vld.sshfl [vmem:[#allocation1 + $0x8] sm:$0xff pattern:$0x73625140]
        %1058 = vrot.lane.b32.xlu0 %v1054, 109
        %v1059 = vpop.permute.xlu0 %1058
        %1060 = vrot.lane.b32.xlu0 %v1055, 109
        %v1061 = vpop.permute.xlu0 %1060
        %vm1062 = vcmp.lt.s32.totalorder %v259, 109
        %v1063 = vsel %vm1062, %v1059, %v1061
        %v1064 = vsel %vm1062, %v1061, %v1059
        %s1065 = scalar_lea.vmem [#allocation3], 136
        %v1066 = vld [vmem:[%s1065] sm:$0xf]
        %1068 = vst [vmem:[#allocation1] ss:$4 sm:$0xff] %v1066
        %v1069 = vld.sshfl [vmem:[#allocation1] sm:$0xff pattern:$0x73625140]
        %v1070 = vld.sshfl [vmem:[#allocation1 + $0x8] sm:$0xff pattern:$0x73625140]
        %v1073 = vmul.f32 %v1063, %v1069
        %v1074 = vmul.f32 %v1064, %v1070
        %v1075 = vadd.f32 %v979, %v1073
        %v1076 = vadd.f32 %v980, %v1074
        %1077 = vst [vmem:[#allocation1] ss:$4 sm:$0xff] %v247
        %v1078 = vld.sshfl [vmem:[#allocation1] sm:$0xff pattern:$0x73625140]
        %v1079 = vld.sshfl [vmem:[#allocation1 + $0x8] sm:$0xff pattern:$0x73625140]
        %1082 = vrot.lane.b32.xlu0 %v1078, 99
        %v1083 = vpop.permute.xlu0 %1082
        %1084 = vrot.lane.b32.xlu0 %v1079, 99
        %v1085 = vpop.permute.xlu0 %1084
        %vm1086 = vcmp.lt.s32.totalorder %v259, 99
        %v1087 = vsel %vm1086, %v1083, %v1085
        %v1088 = vsel %vm1086, %v1085, %v1083
        %s1089 = scalar_lea.vmem [#allocation3], 140
        %v1090 = vld [vmem:[%s1089] sm:$0xf]
        %1092 = vst [vmem:[#allocation1] ss:$4 sm:$0xff] %v1090
        %v1093 = vld.sshfl [vmem:[#allocation1] sm:$0xff pattern:$0x73625140]
        %v1094 = vld.sshfl [vmem:[#allocation1 + $0x8] sm:$0xff pattern:$0x73625140]
        %v1097 = vmul.f32 %v1087, %v1093
        %v1098 = vmul.f32 %v1088, %v1094
        %v1099 = vadd.f32 %v1003, %v1097
        %v1100 = vadd.f32 %v1004, %v1098
        %1101 = vst [vmem:[#allocation1] ss:$4 sm:$0xff] %v247
        %v1102 = vld.sshfl [vmem:[#allocation1] sm:$0xff pattern:$0x73625140]
        %v1103 = vld.sshfl [vmem:[#allocation1 + $0x8] sm:$0xff pattern:$0x73625140]
        %1106 = vrot.lane.b32.xlu0 %v1102, 98
        %v1107 = vpop.permute.xlu0 %1106
        %1108 = vrot.lane.b32.xlu0 %v1103, 98
        %v1109 = vpop.permute.xlu0 %1108
        %vm1110 = vcmp.lt.s32.totalorder %v259, 98
        %v1111 = vsel %vm1110, %v1107, %v1109
        %v1112 = vsel %vm1110, %v1109, %v1107
        %s1113 = scalar_lea.vmem [#allocation3], 144
        %v1114 = vld [vmem:[%s1113] sm:$0xf]
        %1116 = vst [vmem:[#allocation1] ss:$4 sm:$0xff] %v1114
        %v1117 = vld.sshfl [vmem:[#allocation1] sm:$0xff pattern:$0x73625140]
        %v1118 = vld.sshfl [vmem:[#allocation1 + $0x8] sm:$0xff pattern:$0x73625140]
        %v1121 = vmul.f32 %v1111, %v1117
        %v1122 = vmul.f32 %v1112, %v1118
        %v1123 = vadd.f32 %v1027, %v1121
        %v1124 = vadd.f32 %v1028, %v1122
        %1125 = vst [vmem:[#allocation1] ss:$4 sm:$0xff] %v247
        %v1126 = vld.sshfl [vmem:[#allocation1] sm:$0xff pattern:$0x73625140]
        %v1127 = vld.sshfl [vmem:[#allocation1 + $0x8] sm:$0xff pattern:$0x73625140]
        %1130 = vrot.lane.b32.xlu0 %v1126, 97
        %v1131 = vpop.permute.xlu0 %1130
        %1132 = vrot.lane.b32.xlu0 %v1127, 97
        %v1133 = vpop.permute.xlu0 %1132
        %vm1134 = vcmp.lt.s32.totalorder %v259, 97
        %v1135 = vsel %vm1134, %v1131, %v1133
        %v1136 = vsel %vm1134, %v1133, %v1131
        %s1137 = scalar_lea.vmem [#allocation3], 148
        %v1138 = vld [vmem:[%s1137] sm:$0xf]
        %1140 = vst [vmem:[#allocation1] ss:$4 sm:$0xff] %v1138
        %v1141 = vld.sshfl [vmem:[#allocation1] sm:$0xff pattern:$0x73625140]
        %v1142 = vld.sshfl [vmem:[#allocation1 + $0x8] sm:$0xff pattern:$0x73625140]
        %v1145 = vmul.f32 %v1135, %v1141
        %v1146 = vmul.f32 %v1136, %v1142
        %v1147 = vadd.f32 %v1051, %v1145
        %v1148 = vadd.f32 %v1052, %v1146
        %1149 = vst [vmem:[#allocation1] ss:$4 sm:$0xff] %v247
        %v1150 = vld.sshfl [vmem:[#allocation1] sm:$0xff pattern:$0x73625140]
        %v1151 = vld.sshfl [vmem:[#allocation1 + $0x8] sm:$0xff pattern:$0x73625140]
        %1154 = vrot.lane.b32.xlu0 %v1150, 96
        %v1155 = vpop.permute.xlu0 %1154
        %1156 = vrot.lane.b32.xlu0 %v1151, 96
        %v1157 = vpop.permute.xlu0 %1156
        %vm1158 = vcmp.lt.s32.totalorder %v259, 96
        %v1159 = vsel %vm1158, %v1155, %v1157
        %v1160 = vsel %vm1158, %v1157, %v1155
        %s1161 = scalar_lea.vmem [#allocation3], 152
        %v1162 = vld [vmem:[%s1161] sm:$0xf]
        %1164 = vst [vmem:[#allocation1] ss:$4 sm:$0xff] %v1162
        %v1165 = vld.sshfl [vmem:[#allocation1] sm:$0xff pattern:$0x73625140]
        %v1166 = vld.sshfl [vmem:[#allocation1 + $0x8] sm:$0xff pattern:$0x73625140]
        %v1169 = vmul.f32 %v1159, %v1165
        %v1170 = vmul.f32 %v1160, %v1166
        %v1171 = vadd.f32 %v1075, %v1169
        %v1172 = vadd.f32 %v1076, %v1170
        %1173 = vst [vmem:[#allocation1] ss:$4 sm:$0xff] %v247
        %v1174 = vld.sshfl [vmem:[#allocation1] sm:$0xff pattern:$0x73625140]
        %v1175 = vld.sshfl [vmem:[#allocation1 + $0x8] sm:$0xff pattern:$0x73625140]
        %1178 = vrot.lane.b32.xlu0 %v1174, 95
        %v1179 = vpop.permute.xlu0 %1178
        %1180 = vrot.lane.b32.xlu0 %v1175, 95
        %v1181 = vpop.permute.xlu0 %1180
        %vm1182 = vcmp.lt.s32.totalorder %v259, 95
        %v1183 = vsel %vm1182, %v1179, %v1181
        %v1184 = vsel %vm1182, %v1181, %v1179
        %s1185 = scalar_lea.vmem [#allocation3], 156
        %v1186 = vld [vmem:[%s1185] sm:$0xf]
        %1188 = vst [vmem:[#allocation1] ss:$4 sm:$0xff] %v1186
        %v1189 = vld.sshfl [vmem:[#allocation1] sm:$0xff pattern:$0x73625140]
        %v1190 = vld.sshfl [vmem:[#allocation1 + $0x8] sm:$0xff pattern:$0x73625140]
        %v1193 = vmul.f32 %v1183, %v1189
        %v1194 = vmul.f32 %v1184, %v1190
        %v1195 = vadd.f32 %v1099, %v1193
        %v1196 = vadd.f32 %v1100, %v1194
        %1197 = vst [vmem:[#allocation1] ss:$4 sm:$0xff] %v247
        %v1198 = vld.sshfl [vmem:[#allocation1] sm:$0xff pattern:$0x73625140]
        %v1199 = vld.sshfl [vmem:[#allocation1 + $0x8] sm:$0xff pattern:$0x73625140]
        %1202 = vrot.lane.b32.xlu0 %v1198, 94
        %v1203 = vpop.permute.xlu0 %1202
        %1204 = vrot.lane.b32.xlu0 %v1199, 94
        %v1205 = vpop.permute.xlu0 %1204
        %vm1206 = vcmp.lt.s32.totalorder %v259, 94
        %v1207 = vsel %vm1206, %v1203, %v1205
        %v1208 = vsel %vm1206, %v1205, %v1203
        %s1209 = scalar_lea.vmem [#allocation3], 160
        %v1210 = vld [vmem:[%s1209] sm:$0xf]
        %1212 = vst [vmem:[#allocation1] ss:$4 sm:$0xff] %v1210
        %v1213 = vld.sshfl [vmem:[#allocation1] sm:$0xff pattern:$0x73625140]
        %v1214 = vld.sshfl [vmem:[#allocation1 + $0x8] sm:$0xff pattern:$0x73625140]
        %v1217 = vmul.f32 %v1207, %v1213
        %v1218 = vmul.f32 %v1208, %v1214
        %v1219 = vadd.f32 %v1123, %v1217
        %v1220 = vadd.f32 %v1124, %v1218
        %1221 = vst [vmem:[#allocation1] ss:$4 sm:$0xff] %v247
        %v1222 = vld.sshfl [vmem:[#allocation1] sm:$0xff pattern:$0x73625140]
        %v1223 = vld.sshfl [vmem:[#allocation1 + $0x8] sm:$0xff pattern:$0x73625140]
        %1226 = vrot.lane.b32.xlu0 %v1222, 93
        %v1227 = vpop.permute.xlu0 %1226
        %1228 = vrot.lane.b32.xlu0 %v1223, 93
        %v1229 = vpop.permute.xlu0 %1228
        %vm1230 = vcmp.lt.s32.totalorder %v259, 93
        %v1231 = vsel %vm1230, %v1227, %v1229
        %v1232 = vsel %vm1230, %v1229, %v1227
        %s1233 = scalar_lea.vmem [#allocation3], 164
        %v1234 = vld [vmem:[%s1233] sm:$0xf]
        %1236 = vst [vmem:[#allocation1] ss:$4 sm:$0xff] %v1234
        %v1237 = vld.sshfl [vmem:[#allocation1] sm:$0xff pattern:$0x73625140]
        %v1238 = vld.sshfl [vmem:[#allocation1 + $0x8] sm:$0xff pattern:$0x73625140]
        %v1241 = vmul.f32 %v1231, %v1237
        %v1242 = vmul.f32 %v1232, %v1238
        %v1243 = vadd.f32 %v1147, %v1241
        %v1244 = vadd.f32 %v1148, %v1242
        %1245 = vst [vmem:[#allocation1] ss:$4 sm:$0xff] %v247
        %v1246 = vld.sshfl [vmem:[#allocation1] sm:$0xff pattern:$0x73625140]
        %v1247 = vld.sshfl [vmem:[#allocation1 + $0x8] sm:$0xff pattern:$0x73625140]
        %1250 = vrot.lane.b32.xlu0 %v1246, 83
        %v1251 = vpop.permute.xlu0 %1250
        %1252 = vrot.lane.b32.xlu0 %v1247, 83
        %v1253 = vpop.permute.xlu0 %1252
        %vm1254 = vcmp.lt.s32.totalorder %v259, 83
        %v1255 = vsel %vm1254, %v1251, %v1253
        %v1256 = vsel %vm1254, %v1253, %v1251
        %s1257 = scalar_lea.vmem [#allocation3], 168
        %v1258 = vld [vmem:[%s1257] sm:$0xf]
        %1260 = vst [vmem:[#allocation1] ss:$4 sm:$0xff] %v1258
        %v1261 = vld.sshfl [vmem:[#allocation1] sm:$0xff pattern:$0x73625140]
        %v1262 = vld.sshfl [vmem:[#allocation1 + $0x8] sm:$0xff pattern:$0x73625140]
        %v1265 = vmul.f32 %v1255, %v1261
        %v1266 = vmul.f32 %v1256, %v1262
        %v1267 = vadd.f32 %v1171, %v1265
        %v1268 = vadd.f32 %v1172, %v1266
        %1269 = vst [vmem:[#allocation1] ss:$4 sm:$0xff] %v247
        %v1270 = vld.sshfl [vmem:[#allocation1] sm:$0xff pattern:$0x73625140]
        %v1271 = vld.sshfl [vmem:[#allocation1 + $0x8] sm:$0xff pattern:$0x73625140]
        %1274 = vrot.lane.b32.xlu0 %v1270, 82
        %v1275 = vpop.permute.xlu0 %1274
        %1276 = vrot.lane.b32.xlu0 %v1271, 82
        %v1277 = vpop.permute.xlu0 %1276
        %vm1278 = vcmp.lt.s32.totalorder %v259, 82
        %v1279 = vsel %vm1278, %v1275, %v1277
        %v1280 = vsel %vm1278, %v1277, %v1275
        %s1281 = scalar_lea.vmem [#allocation3], 172
        %v1282 = vld [vmem:[%s1281] sm:$0xf]
        %1284 = vst [vmem:[#allocation1] ss:$4 sm:$0xff] %v1282
        %v1285 = vld.sshfl [vmem:[#allocation1] sm:$0xff pattern:$0x73625140]
        %v1286 = vld.sshfl [vmem:[#allocation1 + $0x8] sm:$0xff pattern:$0x73625140]
        %v1289 = vmul.f32 %v1279, %v1285
        %v1290 = vmul.f32 %v1280, %v1286
        %v1291 = vadd.f32 %v1195, %v1289
        %v1292 = vadd.f32 %v1196, %v1290
        %1293 = vst [vmem:[#allocation1] ss:$4 sm:$0xff] %v247
        %v1294 = vld.sshfl [vmem:[#allocation1] sm:$0xff pattern:$0x73625140]
        %v1295 = vld.sshfl [vmem:[#allocation1 + $0x8] sm:$0xff pattern:$0x73625140]
        %1298 = vrot.lane.b32.xlu0 %v1294, 81
        %v1299 = vpop.permute.xlu0 %1298
        %1300 = vrot.lane.b32.xlu0 %v1295, 81
        %v1301 = vpop.permute.xlu0 %1300
        %vm1302 = vcmp.lt.s32.totalorder %v259, 81
        %v1303 = vsel %vm1302, %v1299, %v1301
        %v1304 = vsel %vm1302, %v1301, %v1299
        %s1305 = scalar_lea.vmem [#allocation3], 176
        %v1306 = vld [vmem:[%s1305] sm:$0xf]
        %1308 = vst [vmem:[#allocation1] ss:$4 sm:$0xff] %v1306
        %v1309 = vld.sshfl [vmem:[#allocation1] sm:$0xff pattern:$0x73625140]
        %v1310 = vld.sshfl [vmem:[#allocation1 + $0x8] sm:$0xff pattern:$0x73625140]
        %v1313 = vmul.f32 %v1303, %v1309
        %v1314 = vmul.f32 %v1304, %v1310
        %v1315 = vadd.f32 %v1219, %v1313
        %v1316 = vadd.f32 %v1220, %v1314
        %1317 = vst [vmem:[#allocation1] ss:$4 sm:$0xff] %v247
        %v1318 = vld.sshfl [vmem:[#allocation1] sm:$0xff pattern:$0x73625140]
        %v1319 = vld.sshfl [vmem:[#allocation1 + $0x8] sm:$0xff pattern:$0x73625140]
        %1322 = vrot.lane.b32.xlu0 %v1318, 80
        %v1323 = vpop.permute.xlu0 %1322
        %1324 = vrot.lane.b32.xlu0 %v1319, 80
        %v1325 = vpop.permute.xlu0 %1324
        %vm1326 = vcmp.lt.s32.totalorder %v259, 80
        %v1327 = vsel %vm1326, %v1323, %v1325
        %v1328 = vsel %vm1326, %v1325, %v1323
        %s1329 = scalar_lea.vmem [#allocation3], 180
        %v1330 = vld [vmem:[%s1329] sm:$0xf]
        %1332 = vst [vmem:[#allocation1] ss:$4 sm:$0xff] %v1330
        %v1333 = vld.sshfl [vmem:[#allocation1] sm:$0xff pattern:$0x73625140]
        %v1334 = vld.sshfl [vmem:[#allocation1 + $0x8] sm:$0xff pattern:$0x73625140]
        %v1337 = vmul.f32 %v1327, %v1333
        %v1338 = vmul.f32 %v1328, %v1334
        %v1339 = vadd.f32 %v1243, %v1337
        %v1340 = vadd.f32 %v1244, %v1338
        %1341 = vst [vmem:[#allocation1] ss:$4 sm:$0xff] %v247
        %v1342 = vld.sshfl [vmem:[#allocation1] sm:$0xff pattern:$0x73625140]
        %v1343 = vld.sshfl [vmem:[#allocation1 + $0x8] sm:$0xff pattern:$0x73625140]
        %1346 = vrot.lane.b32.xlu0 %v1342, 79
        %v1347 = vpop.permute.xlu0 %1346
        %1348 = vrot.lane.b32.xlu0 %v1343, 79
        %v1349 = vpop.permute.xlu0 %1348
        %vm1350 = vcmp.lt.s32.totalorder %v259, 79
        %v1351 = vsel %vm1350, %v1347, %v1349
        %v1352 = vsel %vm1350, %v1349, %v1347
        %s1353 = scalar_lea.vmem [#allocation3], 184
        %v1354 = vld [vmem:[%s1353] sm:$0xf]
        %1356 = vst [vmem:[#allocation1] ss:$4 sm:$0xff] %v1354
        %v1357 = vld.sshfl [vmem:[#allocation1] sm:$0xff pattern:$0x73625140]
        %v1358 = vld.sshfl [vmem:[#allocation1 + $0x8] sm:$0xff pattern:$0x73625140]
        %v1361 = vmul.f32 %v1351, %v1357
        %v1362 = vmul.f32 %v1352, %v1358
        %v1363 = vadd.f32 %v1267, %v1361
        %v1364 = vadd.f32 %v1268, %v1362
        %1365 = vst [vmem:[#allocation1] ss:$4 sm:$0xff] %v247
        %v1366 = vld.sshfl [vmem:[#allocation1] sm:$0xff pattern:$0x73625140]
        %v1367 = vld.sshfl [vmem:[#allocation1 + $0x8] sm:$0xff pattern:$0x73625140]
        %1370 = vrot.lane.b32.xlu0 %v1366, 78
        %v1371 = vpop.permute.xlu0 %1370
        %1372 = vrot.lane.b32.xlu0 %v1367, 78
        %v1373 = vpop.permute.xlu0 %1372
        %vm1374 = vcmp.lt.s32.totalorder %v259, 78
        %v1375 = vsel %vm1374, %v1371, %v1373
        %v1376 = vsel %vm1374, %v1373, %v1371
        %s1377 = scalar_lea.vmem [#allocation3], 188
        %v1378 = vld [vmem:[%s1377] sm:$0xf]
        %1380 = vst [vmem:[#allocation1] ss:$4 sm:$0xff] %v1378
        %v1381 = vld.sshfl [vmem:[#allocation1] sm:$0xff pattern:$0x73625140]
        %v1382 = vld.sshfl [vmem:[#allocation1 + $0x8] sm:$0xff pattern:$0x73625140]
        %v1385 = vmul.f32 %v1375, %v1381
        %v1386 = vmul.f32 %v1376, %v1382
        %v1387 = vadd.f32 %v1291, %v1385
        %v1388 = vadd.f32 %v1292, %v1386
        %1389 = vst [vmem:[#allocation1] ss:$4 sm:$0xff] %v247
        %v1390 = vld.sshfl [vmem:[#allocation1] sm:$0xff pattern:$0x73625140]
        %v1391 = vld.sshfl [vmem:[#allocation1 + $0x8] sm:$0xff pattern:$0x73625140]
        %1394 = vrot.lane.b32.xlu0 %v1390, 77
        %v1395 = vpop.permute.xlu0 %1394
        %1396 = vrot.lane.b32.xlu0 %v1391, 77
        %v1397 = vpop.permute.xlu0 %1396
        %vm1398 = vcmp.lt.s32.totalorder %v259, 77
        %v1399 = vsel %vm1398, %v1395, %v1397
        %v1400 = vsel %vm1398, %v1397, %v1395
        %s1401 = scalar_lea.vmem [#allocation3], 192
        %v1402 = vld [vmem:[%s1401] sm:$0xf]
        %1404 = vst [vmem:[#allocation1] ss:$4 sm:$0xff] %v1402
        %v1405 = vld.sshfl [vmem:[#allocation1] sm:$0xff pattern:$0x73625140]
        %v1406 = vld.sshfl [vmem:[#allocation1 + $0x8] sm:$0xff pattern:$0x73625140]
        %v1409 = vmul.f32 %v1399, %v1405
        %v1410 = vmul.f32 %v1400, %v1406
        %v1411 = vadd.f32 %v1315, %v1409
        %v1412 = vadd.f32 %v1316, %v1410
        %v1413 = vadd.f32 %v1411, %v1339
        %v1414 = vadd.f32 %v1412, %v1340
        %v1415 = vadd.f32 %v1363, %v1387
        %v1416 = vadd.f32 %v1364, %v1388
        %v1417 = vadd.f32 %v1413, %v1415
        %v1418 = vadd.f32 %v1414, %v1416
        %v1421 = vrot.slane %v1418, 6
        %vm1422 = vcmask 1041408
        %v1423 = vsel %vm1422, %v1417, %v1421
        %1425 = vst [vmem:[#allocation2] sm:$0xf] %v1423
        %v1426 = vld [vmem:[#allocation2] ss:$2 sm:$0x3]
        %v1427 = vld [vmem:[%s245] ss:$2 sm:$0x3]
        %v1428 = vadd.f32 %v1426, %v1427
        %v1429 = vxor.u32 %v1428, 2147483648
        %v1430 = vmul.f32 %v1429, 1.442695
        %v1431 = vpow.pop %v1430
        %v1432 = vadd.f32 %v1431, 1.0
        %v1433 = vrcp.pop %v1432
        %v1434 = vmul.f32 %v1432, %v1433
        %v1435 = vsub.f32 1.0, %v1434
        %v1436 = vmul.f32 %v1433, %v1435
        %v1437 = vadd.f32 %v1433, %v1436
        %vm1438 = vweird.f32 %v1432
        %vm1439 = vweird.f32 %v1433
        %vm1440 = vmor %vm1438, %vm1439
        %v1441 = vsel %vm1440, %v1433, %v1437
        %v1442 = vand.u32 2147483647, %v1432
        %vm1443 = vcmp.eq.f32.partialorder %v1442, 8.507059e+37
        %v1444 = vand.u32 %v1432, 2147483648
        %v1445 = vor.u32 1.1754944e-38, %v1444
        %v1446 = vsel %vm1443, %v1445, %v1441
        %v1447 = vmul.f32 1.0, %v1446
        %v1448 = vld [vmem:[%s157] sm:$0xff]
        %v1450 = vperm.slane %v1447, 0
        %v1451 = vperm.slane %v1447, 1
        %v1452 = vrot.slane %v1451, 4
        %v1453 = vsel %vm186, %v1450, %v1452
        %v1455 = vmul.f32 %v1448, %v1453
        %1456 = vst [vmem:[%s178] sm:$0xff] %v1455
        %s1457 = sand.u32 %s75, 1
        %s1458 = scalar_lea.sflag [#allocation5], %s1457
        %s1459 = sand.u32 %s75, 1
        %s1460 = smul.addr %s1459, 8
        %s1461 = scalar_lea.vmem [#allocation8], %s1460
        // Predicated region
        $region37: #{tpu_custom_call.1} parent=27 // pred_check
          %p1462 = pneg %p85
        $region38: #{tpu_custom_call.1} parent=27 // pred_check_branch
          %1464 = sbr.rel (%p1462) target = $region40
        $region39: #{tpu_custom_call.1} parent=27 // pred_region
          %1466 = vsyncadd %s1458, 0
          %s1467 = smul.addr %s20, 2
          %s1468 = smul.addr %s1467, 4
          %s1469 = scalar_lea.hbm %s2, %s1468
          %s1471 = sshll.u32 %s1461, 4
          %s1472 = int_to_ptr.vmem [resolvable:$true] %s1471
          %s1473 = sshll.u32 %s1469, 4
          %s1474 = int_to_ptr.hbm [resolvable:$true] %s1473
          %1476 = dma.vmem_to_hbm [thread:$0]  %s1472, 128, %s1474, %s1458
        $region40: #{tpu_custom_call.1} parent=27 // pred_fallthru
          _
      $region28: #{tpu_custom_call.1} parent=5 // pred_fallthru
        _
      %p1477 = scmp.le.s32.totalorder 2, %s15
      // Predicated region
      $region41: #{tpu_custom_call.1} parent=5 // pred_check
        %p1478 = pneg %p1477
      $region42: #{tpu_custom_call.1} parent=5 // pred_check_branch
        %1480 = sbr.rel (%p1478) target = $region44
      $region43: #{tpu_custom_call.1} parent=5 // pred_region
        %s1481 = ssub.s32 %s15, 2
        // Predicated region
        $region45: #{tpu_custom_call.1} parent=43 // pred_check
          %p1482 = pneg %p91
        $region46: #{tpu_custom_call.1} parent=43 // pred_check_branch
          %1484 = sbr.rel (%p1482) target = $region48
        $region47: #{tpu_custom_call.1} parent=43 // pred_region
          %s1485 = sand.u32 %s76, 1
          %s1486 = scalar_lea.sflag [#allocation5], %s1485
          %s1487 = sand.u32 %s76, 1
          %s1488 = smul.addr %s1487, 8
          %s1489 = scalar_lea.vmem [#allocation8], %s1488
          %1491 = dma.done %s1486, 128
        $region48: #{tpu_custom_call.1} parent=43 // pred_fallthru
          _
      $region44: #{tpu_custom_call.1} parent=5 // pred_fallthru
        _
    $region6: #{tpu_custom_call.1} parent=1 // loop_footer
      %s19 = sadd.s32 1, %s15
    $region7: #{tpu_custom_call.1} parent=1 // loop_footer_branch
      %14 = sbr.rel target = $region3
    $region8: #{tpu_custom_call.1} parent=1 // loop_exit
      _
    %1492 = vsyncpa [#allocation4], 1
    %s1493 = scalar_lea.sflag [#allocation4], 1
    %1494 = vsyncpa %s1493, 1
    %1495 = vsyncpa [#allocation7], 1
    %s1496 = scalar_lea.sflag [#allocation7], 1
    %1497 = vsyncpa %s1496, 1
    %1498 = vsyncpa [#allocation5], 1
    %s1499 = scalar_lea.sflag [#allocation5], 1
    %1500 = vsyncpa %s1499, 1

</llo_original>
